<compile_context>
chip_gen: v7x
topology: tpu7x:2x2x1
jax: 0.10.0
libtpu: 0.0.40
codegen_flags: <defaults>
</compile_context>

<pallas_src>
import jax
import jax.numpy as jnp
from jax import lax
from jax.experimental import pallas as pl
from jax.experimental.pallas import tpu as pltpu


# (head name, which stacked-input slot it reads): 0=left, 1=right, 2=body, 3=fuse.
_HEADS = (
    ("left", 0),
    ("right", 1),
    ("body", 2),
    ("fuse_coord", 3),
    ("fuse_align", 3),
)
_NUM_HEADS = len(_HEADS)
_NUM_INPUTS = 4


def _round_up(x, m):
    return (x + m - 1) // m * m


def _time_tiling(t):
    """(time_tile, padded_T): biggest tile up to 2048; pad T up, never shrink."""
    cap = 2048
    if t <= cap:
        tt = _round_up(t, 8)          # single tile == full (padded) time axis
        return tt, tt
    return cap, _round_up(t, cap)


# ------------------------------ Pallas kernel ------------------------------

def _recognition_head_kernel(x_ref, w_ref, b_ref, o_ref):
    # x_ref: (1, 4C, Tt) tile of the channel-stacked activations, original
    #        (B, C, T) layout so time sits in lanes.
    # w_ref: (4C, Vtot) block-structured packed weights, VMEM-resident
    #        (constant index map -> fetched once).
    # b_ref: (1, Vtot) packed biases.
    x = x_ref[0]                                      # (4C, Tt)
    # x^T @ W on the MXU: contract the 4C (=128 at test shape) sublane dim,
    # f32 accumulation.  Produces all 5 heads' logits in one lane block.
    acc = lax.dot_general(
        x, w_ref[...],
        dimension_numbers=(((0,), (0,)), ((), ())),
        preferred_element_type=jnp.float32)           # (Tt, Vtot)
    o_ref[...] = acc + b_ref[...]                     # bias add on the VPU


# ------------------------------ wrapper ------------------------------------

def recognition_head_pallas(params, left_output, right_output, fuse_output,
                            body_output):
    """Inputs are (B, C, T); returns dict of (T, B, V) logits (PyTorch layout)."""
    B, C, T = left_output.shape
    V = params["left"][0].shape[1]
    Vtot = _NUM_HEADS * V
    Vtot_p = _round_up(Vtot, 128)          # lane-dense packed-output width
    Tt, Tp = _time_tiling(T)

    # Channel-stack the four activations (one small XLA copy) so a single
    # depth-4C matmul serves every head; pad time up to the tile.
    x_cat = jnp.concatenate(
        [left_output, right_output, body_output, fuse_output], axis=1)  # (B,4C,T)
    if Tp != T:
        x_cat = jnp.pad(x_cat, ((0, 0), (0, 0), (0, Tp - T)))

    # Block-structured packed weights: head h reads input slot s -> its weight
    # occupies rows [s*C, (s+1)*C) and columns [h*V, (h+1)*V); rest is zero, so
    # the fused matmul is exactly the 5 independent Linears.
    w_big = jnp.zeros((_NUM_INPUTS * C, Vtot_p), jnp.float32)
    b_big = jnp.zeros((1, Vtot_p), jnp.float32)
    for h, (name, slot) in enumerate(_HEADS):
        w, b = params[name]
        w_big = w_big.at[slot * C:(slot + 1) * C, h * V:(h + 1) * V].set(w)
        b_big = b_big.at[0, h * V:(h + 1) * V].set(b)

    out = pl.pallas_call(
        _recognition_head_kernel,
        out_shape=jax.ShapeDtypeStruct((Tp, B * Vtot_p), jnp.float32),
        grid_spec=pltpu.PrefetchScalarGridSpec(
            num_scalar_prefetch=0,
            grid=(B, Tp // Tt),            # batch outer (v7x megacore), time inner
            in_specs=[
                pl.BlockSpec((1, _NUM_INPUTS * C, Tt), lambda b, t: (b, 0, t)),
                # Constant index maps -> weights/bias DMAed once, then resident.
                # TODO(synk): at production hidden/vocab sizes (Vtot_p in the
                # thousands) add pipeline_mode=pl.Buffered(1) or a vocab-tile
                # grid axis and set vmem_limit_bytes so the double-buffered
                # resident stack stays under v7x's 64 MiB VMEM.
                pl.BlockSpec((_NUM_INPUTS * C, Vtot_p), lambda b, t: (0, 0)),
                pl.BlockSpec((1, Vtot_p), lambda b, t: (0, 0)),
            ],
            out_specs=pl.BlockSpec((Tt, Vtot_p), lambda b, t: (t, b)),
        ),
        compiler_params=pltpu.CompilerParams(
            dimension_semantics=("parallel", "parallel")),
    )(x_cat, w_big, b_big)

    # (Tp, B*Vtot_p) -> (T, B, Vtot_p): pure reshape + slice, no transpose.
    logits = out.reshape(Tp, B, Vtot_p)[:T]

    def head(h):
        return logits[..., h * V:(h + 1) * V]

    return {
        "fuse_gloss_logits": head(4),
        "left_gloss_logits": head(0),
        "right_gloss_logits": head(1),
        "body_gloss_logits": head(2),
        "fuse_coord_logits": head(3),
    }


# ------------------------------ params -------------------------------------

def init_linear_params(key, in_dim, out_dim):
    # Mimics nn.Linear default init (uniform +/- 1/sqrt(in_dim)).
    kw, kb = jax.random.split(key)
    bound = 1.0 / jnp.sqrt(jnp.float32(in_dim))
    w = jax.random.uniform(kw, (in_dim, out_dim), jnp.float32, -bound, bound)
    b = jax.random.uniform(kb, (out_dim,), jnp.float32, -bound, bound)
    return w, b


def init_recognition_head_params(key, hidden, num_classes):
    keys = jax.random.split(key, 5)
    return {
        "left": init_linear_params(keys[0], hidden, num_classes),
        "right": init_linear_params(keys[1], hidden, num_classes),
        "body": init_linear_params(keys[2], hidden, num_classes),
        "fuse_coord": init_linear_params(keys[3], hidden, num_classes),
        # TODO(synk): FeatureAlignment's definition is not provided; it is
        # modeled as a single Linear(hidden -> num_classes) projection.
        "fuse_align": init_linear_params(keys[4], hidden, num_classes),
    }


# -------------------------------- main --------------------------------------

if __name__ == "__main__":
    B, C, T = 2, 32, 1024       # batch, hidden (residual_blocks[-1]), time
    NUM_CLASSES = 16            # len(gloss_tokenizer)

    key = jax.random.PRNGKey(0)
    kp, kl, kr, kf, kb = jax.random.split(key, 5)

    params = init_recognition_head_params(kp, C, NUM_CLASSES)
    left = jax.random.normal(kl, (B, C, T), jnp.float32)
    right = jax.random.normal(kr, (B, C, T), jnp.float32)
    fuse = jax.random.normal(kf, (B, C, T), jnp.float32)
    body = jax.random.normal(kb, (B, C, T), jnp.float32)

    fwd = jax.jit(recognition_head_pallas)
    outputs = jax.block_until_ready(fwd(params, left, right, fuse, body))

    # Pure-JAX reference for every head.
    def ref(x, wb):
        w, b = wb
        return jnp.einsum("bct,cv->tbv", x, w, precision="highest") + b

    expected = {
        "left_gloss_logits": ref(left, params["left"]),
        "right_gloss_logits": ref(right, params["right"]),
        "body_gloss_logits": ref(body, params["body"]),
        "fuse_coord_logits": ref(fuse, params["fuse_coord"]),
        "fuse_gloss_logits": ref(fuse, params["fuse_align"]),
    }
    for name, want in expected.items():
        got = outputs[name]
        assert got.shape == (T, B, NUM_CLASSES), (name, got.shape)
        assert jnp.allclose(got, want, atol=1e-4, rtol=1e-4), name

    print("KERNEL_OK")
</pallas_src>

<mosaic_0001>
module attributes {stable_mosaic.version = 11 : i64} {
  func.func @_recognition_head_kernel(%arg0: i32, %arg1: i32, %arg2: memref<1x128x1024xf32, #tpu.memory_space<vmem>>, %arg3: memref<128x128xf32, #tpu.memory_space<vmem>>, %arg4: memref<1x128xf32, #tpu.memory_space<vmem>>, %arg5: memref<1024x128xf32, #tpu.memory_space<vmem>>) attributes {dimension_semantics = [#tpu.dimension_semantics<parallel>, #tpu.dimension_semantics<parallel>], iteration_bounds = array<i64: 2, 1>, scalar_prefetch = 0 : i64, scratch_operands = 0 : i64, tpu.core_type = #tpu.core_type<tc>, window_params = [{transform_indices = @transform_0, window_bounds = array<i64: 1, 128, 1024>}, {pipeline_mode = #tpu.pipeline_mode<synchronous>, transform_indices = @transform_1, window_bounds = array<i64: 128, 128>}, {pipeline_mode = #tpu.pipeline_mode<synchronous>, transform_indices = @transform_2, window_bounds = array<i64: 1, 128>}, {transform_indices = @transform_3, window_bounds = array<i64: 1024, 128>}]} {
    %c0 = arith.constant 0 : index
    %c0_0 = arith.constant 0 : index
    %c0_1 = arith.constant 0 : index
    %0 = vector.load %arg2[%c0, %c0_0, %c0_1] : memref<1x128x1024xf32, #tpu.memory_space<vmem>>, vector<1x128x1024xf32>
    %1 = vector.shape_cast %0 : vector<1x128x1024xf32> to vector<128x1024xf32>
    %c0_2 = arith.constant 0 : index
    %c0_3 = arith.constant 0 : index
    %2 = vector.load %arg3[%c0_2, %c0_3] : memref<128x128xf32, #tpu.memory_space<vmem>>, vector<128x128xf32>
    %cst = arith.constant dense<0.000000e+00> : vector<1024x128xf32>
    %3 = tpu.matmul %1, %2, %cst {dimension_numbers = #tpu.dot_dimension_numbers<[0], [0], [1], [1], [0, 1, 1, 1], [], []>} : vector<128x1024xf32>, vector<128x128xf32>, vector<1024x128xf32> -> vector<1024x128xf32>
    %c0_4 = arith.constant 0 : index
    %c0_5 = arith.constant 0 : index
    %4 = vector.load %arg4[%c0_4, %c0_5] : memref<1x128xf32, #tpu.memory_space<vmem>>, vector<1x128xf32>
    %5 = vector.broadcast %4 : vector<1x128xf32> to vector<1024x128xf32>
    %6 = arith.addf %3, %5 : vector<1024x128xf32>
    %c0_6 = arith.constant 0 : index
    %c0_7 = arith.constant 0 : index
    %7 = vector.load %arg5[%c0_6, %c0_7] : memref<1024x128xf32, #tpu.memory_space<vmem>>, vector<1024x128xf32>
    tpu.vector_store %arg5[%c0_6, %c0_7], %6 {strides = array<i32>} : memref<1024x128xf32, #tpu.memory_space<vmem>>, vector<1024x128xf32>,
    return
  }
  func.func @transform_0(%arg0: i32, %arg1: i32) -> (i32, i32, i32) {
    %c0_i32 = arith.constant 0 : i32
    %c0_i32_0 = arith.constant 0 : i32
    return %arg0, %c0_i32, %arg1 : i32, i32, i32
  }
  func.func @transform_1(%arg0: i32, %arg1: i32) -> (i32, i32) {
    %c0_i32 = arith.constant 0 : i32
    %c0_i32_0 = arith.constant 0 : i32
    %c0_i32_1 = arith.constant 0 : i32
    return %c0_i32, %c0_i32_0 : i32, i32
  }
  func.func @transform_2(%arg0: i32, %arg1: i32) -> (i32, i32) {
    %c0_i32 = arith.constant 0 : i32
    %c0_i32_0 = arith.constant 0 : i32
    %c0_i32_1 = arith.constant 0 : i32
    return %c0_i32, %c0_i32_0 : i32, i32
  }
  func.func @transform_3(%arg0: i32, %arg1: i32) -> (i32, i32) {
    %c0_i32 = arith.constant 0 : i32
    return %arg1, %arg0 : i32, i32
  }
}

</mosaic_0001>

<llo_original>
// kernel: recognition_head_pallas.1
$region0: #{recognition_head_pallas.1}
  #allocation0 [shape = 'u32[]', space=smem, size = 0x4, offset = 0x4, fixed_abs, tag = 'smem constant byte address 0x4 - core index']
  #allocation1 [shape = 'u32[144,128]{1,0:T(1,128)}', space=vmem, size = 0x12000, scoped, tag = 'internal scratch']
  %s0 = inlined_call_operand.vmem [shape: f32[2,128,1024], index: 0, kind: input, shape index: {}]
  %s1 = inlined_call_operand.vmem [shape: f32[128,128], index: 1, kind: input, shape index: {}]
  %s2 = inlined_call_operand.vmem [shape: f32[1,128], index: 2, kind: input, shape index: {}]
  %s3 = inlined_call_operand.vmem [shape: f32[1024,256], index: 3, kind: output, shape index: {}]
  %s4 = sld [smem:[#allocation0]]
  $region79: #{recognition_head_pallas.1} parent=0
    _
  %s6 = ssub.s32 1, %s4
  %s7 = scalar_select 0, %s6, %s4
  $region1: #{recognition_head_pallas.1} parent=0
    #allocation2 [shape = 'u8[1048576]{0}', space=vmem, size = 0x100000, scoped, tag = 'output window, operand 0']
    loop: start=0, step=1, limit=4
    $region2: #{recognition_head_pallas.1} parent=1 // loop_pre_header
      _
    $region3: #{recognition_head_pallas.1} parent=1 // loop_header
      %s9 = sphi 0, %s13
      %p10 = scmp.ge.s32.totalorder %s9, 4
      %s16 = sphi 0, %s28
      %s17 = sphi 0, %s24
      %s18 = sphi 0, %s16
      %s19 = sphi 0, %s17
      %s20 = sphi 0, %s18
      %s21 = sphi 0, %s19
      %s33 = sphi 0, %s35
      %s36 = sphi 0, %s33
      %s37 = sphi 0, %s36
      %s53 = sphi 0, %s37
      %s57 = sphi 0, %s57
      %s59 = sphi 0, %s57
      %s60 = sphi 0, %s59
      %s74 = sphi 0, %s60
      %s78 = sphi 0, %s78
      %s80 = sphi 0, %s78
      %s81 = sphi 0, %s80
      %s95 = sphi 0, %s81
      %s103 = sphi 0, %s105
      %s106 = sphi 0, %s103
      %s107 = sphi 0, %s106
      %s123 = sphi 0, %s107
    $region4: #{recognition_head_pallas.1} parent=1 // loop_header_branch
      %12 = sbr.rel (%p10) target = $region8
    $region5: #{recognition_head_pallas.1} parent=1 // loop_body
      %s14 = ssub.s32 %s9, 1
      %s15 = ssub.s32 %s9, 2
      %s22 = sadd.s32 1, %s17
      %p23 = scmp.ge.s32.totalorder %s22, 1
      %s24 = scalar_select %p23, 0, %s22
      %s25 = sadd.s32 1, %s16
      %s26 = scalar_select %p23, %s25, %s16
      %p27 = scmp.ge.s32.totalorder %s26, 2
      %s28 = scalar_select %p27, 0, %s26
      %s29 = ssub.s32 %s16, %s28
      %s30 = ssub.s32 %s17, %s24
      %s31 = sor.u32 %s29, %s30
      %p32 = scmp.eq.s32.totalorder %s31, 0
      %s34 = sadd.s32 %s33, 1
      %s35 = scalar_select %p32, %s33, %s34
      %p38 = pneg %p32
      %p39 = scmp.eq.s32.totalorder %s9, 1
      %p40 = por %p38, %p39
      %p41 = scmp.ne.s32.totalorder %s33, %s36
      %p42 = scmp.eq.s32.totalorder %s9, 0
      %p43 = por %p41, %p42
      %p44 = scmp.ne.s32.totalorder %s33, %s36
      %p45 = scmp.eq.s32.totalorder %s14, 1
      %p46 = por %p44, %p45
      %p47 = scmp.ne.s32.totalorder %s36, %s37
      %p48 = scmp.eq.s32.totalorder %s14, 0
      %p49 = por %p47, %p48
      %p50 = scmp.ne.s32.totalorder %s36, %s37
      %p51 = scmp.eq.s32.totalorder %s15, 1
      %p52 = por %p50, %p51
      %p54 = scmp.ne.s32.totalorder %s37, %s53
      %p55 = scmp.eq.s32.totalorder %s15, 0
      %p56 = por %p54, %p55
      %s58 = sadd.s32 %s57, 1
      %p61 = scmp.eq.s32.totalorder %s9, 1
      %p62 = scmp.ne.s32.totalorder %s57, %s59
      %p63 = scmp.eq.s32.totalorder %s9, 0
      %p64 = por %p62, %p63
      %p65 = scmp.ne.s32.totalorder %s57, %s59
      %p66 = scmp.eq.s32.totalorder %s14, 1
      %p67 = por %p65, %p66
      %p68 = scmp.ne.s32.totalorder %s59, %s60
      %p69 = scmp.eq.s32.totalorder %s14, 0
      %p70 = por %p68, %p69
      %p71 = scmp.ne.s32.totalorder %s59, %s60
      %p72 = scmp.eq.s32.totalorder %s15, 1
      %p73 = por %p71, %p72
      %p75 = scmp.ne.s32.totalorder %s60, %s74
      %p76 = scmp.eq.s32.totalorder %s15, 0
      %p77 = por %p75, %p76
      %s79 = sadd.s32 %s78, 1
      %p82 = scmp.eq.s32.totalorder %s9, 1
      %p83 = scmp.ne.s32.totalorder %s78, %s80
      %p84 = scmp.eq.s32.totalorder %s9, 0
      %p85 = por %p83, %p84
      %p86 = scmp.ne.s32.totalorder %s78, %s80
      %p87 = scmp.eq.s32.totalorder %s14, 1
      %p88 = por %p86, %p87
      %p89 = scmp.ne.s32.totalorder %s80, %s81
      %p90 = scmp.eq.s32.totalorder %s14, 0
      %p91 = por %p89, %p90
      %p92 = scmp.ne.s32.totalorder %s80, %s81
      %p93 = scmp.eq.s32.totalorder %s15, 1
      %p94 = por %p92, %p93
      %p96 = scmp.ne.s32.totalorder %s81, %s95
      %p97 = scmp.eq.s32.totalorder %s15, 0
      %p98 = por %p96, %p97
      %s99 = ssub.s32 %s17, %s24
      %s100 = ssub.s32 %s16, %s28
      %s101 = sor.u32 %s99, %s100
      %p102 = scmp.eq.s32.totalorder %s101, 0
      %s104 = sadd.s32 %s103, 1
      %s105 = scalar_select %p102, %s103, %s104
      %p108 = pneg %p102
      %p109 = scmp.eq.s32.totalorder %s9, 1
      %p110 = por %p108, %p109
      %p111 = scmp.ne.s32.totalorder %s103, %s106
      %p112 = scmp.eq.s32.totalorder %s9, 0
      %p113 = por %p111, %p112
      %p114 = scmp.ne.s32.totalorder %s103, %s106
      %p115 = scmp.eq.s32.totalorder %s14, 1
      %p116 = por %p114, %p115
      %p117 = scmp.ne.s32.totalorder %s106, %s107
      %p118 = scmp.eq.s32.totalorder %s14, 0
      %p119 = por %p117, %p118
      %p120 = scmp.ne.s32.totalorder %s106, %s107
      %p121 = scmp.eq.s32.totalorder %s15, 1
      %p122 = por %p120, %p121
      %p124 = scmp.ne.s32.totalorder %s107, %s123
      %p125 = scmp.eq.s32.totalorder %s15, 0
      %p126 = por %p124, %p125
      %p127 = scmp.le.s32.totalorder 1, %s9
      %p128 = scmp.lt.s32.totalorder %s9, 3
      %p129 = pnand %p127, %p128
      %p130 = pneg %p129
      // Predicated region
      $region9: #{recognition_head_pallas.1} parent=5 // pred_check
        _
      $region10: #{recognition_head_pallas.1} parent=5 // pred_check_branch
        %132 = sbr.rel (%p129) target = $region12
      $region11: #{recognition_head_pallas.1} parent=5 // pred_region
        %s133 = ssub.s32 %s9, 1
        // Predicated region
        $region13: #{recognition_head_pallas.1} parent=11 // pred_check
          %p134 = pneg %p70
        $region14: #{recognition_head_pallas.1} parent=11 // pred_check_branch
          %136 = sbr.rel (%p134) target = $region16
        $region15: #{recognition_head_pallas.1} parent=11 // pred_region
          _
        $region16: #{recognition_head_pallas.1} parent=11 // pred_fallthru
          _
        // Predicated region
        $region17: #{recognition_head_pallas.1} parent=11 // pred_check
          %p137 = pneg %p91
        $region18: #{recognition_head_pallas.1} parent=11 // pred_check_branch
          %139 = sbr.rel (%p137) target = $region20
        $region19: #{recognition_head_pallas.1} parent=11 // pred_region
          _
        $region20: #{recognition_head_pallas.1} parent=11 // pred_fallthru
          _
      $region12: #{recognition_head_pallas.1} parent=5 // pred_fallthru
        _
      %p140 = scmp.lt.s32.totalorder %s9, 2
      // Predicated region
      $region21: #{recognition_head_pallas.1} parent=5 // pred_check
        %p141 = pneg %p140
      $region22: #{recognition_head_pallas.1} parent=5 // pred_check_branch
        %143 = sbr.rel (%p141) target = $region24
      $region23: #{recognition_head_pallas.1} parent=5 // pred_region
        // Predicated region
        $region25: #{recognition_head_pallas.1} parent=23 // pred_check
          %p144 = pneg %p43
        $region26: #{recognition_head_pallas.1} parent=23 // pred_check_branch
          %146 = sbr.rel (%p144) target = $region28
        $region27: #{recognition_head_pallas.1} parent=23 // pred_region
          %s147 = smul.u32 8, %s17
          %p148 = scmp.lt.s32.totalorder %s16, 1
          %s149 = scalar_select %p148, %s16, 1
          %p150 = scmp.lt.s32.totalorder %s147, 7
          %s151 = scalar_select %p150, %s147, 7
          %s152 = smul.addr %s149, 128
          %s153 = sadd.s32 %s151, %s152
          %s154 = smul.addr %s153, 8
          %s155 = scalar_lea.vmem %s0, %s154
          %s156 = smul.u32 8, %s17
        $region28: #{recognition_head_pallas.1} parent=23 // pred_fallthru
          _
      $region24: #{recognition_head_pallas.1} parent=5 // pred_fallthru
        _
      %p157 = scmp.le.s32.totalorder 1, %s9
      %p158 = scmp.lt.s32.totalorder %s9, 3
      %p159 = pnand %p157, %p158
      %p160 = pneg %p159
      // Predicated region
      $region29: #{recognition_head_pallas.1} parent=5 // pred_check
        _
      $region30: #{recognition_head_pallas.1} parent=5 // pred_check_branch
        %162 = sbr.rel (%p159) target = $region32
      $region31: #{recognition_head_pallas.1} parent=5 // pred_region
        %s163 = ssub.s32 %s9, 1
        %s164 = smul.u32 8, %s19
        %p165 = scmp.lt.s32.totalorder %s18, 1
        %s166 = scalar_select %p165, %s18, 1
        %p167 = scmp.lt.s32.totalorder %s164, 7
        %s168 = scalar_select %p167, %s164, 7
        %s169 = smul.addr %s166, 128
        %s170 = sadd.s32 %s168, %s169
        %s171 = smul.addr %s170, 8
        %s172 = scalar_lea.vmem %s0, %s171
        %p173 = pneg %p49
        %p174 = pneg %p46
        %p175 = pneg %p70
        %p176 = pneg %p67
        %p177 = pneg %p91
        %p178 = pneg %p88
        %p179 = pneg %p119
        %p180 = pneg %p116
        %s181 = sand.u32 %s106, 1
        %s182 = sand.u32 %s106, 1
        %s183 = smul.addr %s182, 1024
        %s184 = scalar_lea.vmem [#allocation2], %s183
        %s185 = smul.u32 8, %s19
        %p186 = scmp.lt.s32.totalorder %s18, 1
        %s187 = scalar_select %p186, %s18, 1
        %p188 = scmp.lt.s32.totalorder %s185, 7
        %s189 = scalar_select %p188, %s185, 7
        %s190 = smul.addr %s187, 128
        %s191 = sadd.s32 %s189, %s190
        %s192 = smul.addr %s191, 8
        %s193 = scalar_lea.vmem %s0, %s192
        %s194 = smul.u32 8, %s19
        %s195 = smul.u32 128, %s19
        %v196 = vld [vmem:[%s193] sm:$0xff]
        %v197 = vld [vmem:[%s193 + $0x8] sm:$0xff]
        %v198 = vld [vmem:[%s193 + $0x10] sm:$0xff]
        %v199 = vld [vmem:[%s193 + $0x18] sm:$0xff]
        %v200 = vld [vmem:[%s193 + $0x20] sm:$0xff]
        %v201 = vld [vmem:[%s193 + $0x28] sm:$0xff]
        %v202 = vld [vmem:[%s193 + $0x30] sm:$0xff]
        %v203 = vld [vmem:[%s193 + $0x38] sm:$0xff]
        %v204 = vld [vmem:[%s193 + $0x40] sm:$0xff]
        %v205 = vld [vmem:[%s193 + $0x48] sm:$0xff]
        %v206 = vld [vmem:[%s193 + $0x50] sm:$0xff]
        %v207 = vld [vmem:[%s193 + $0x58] sm:$0xff]
        %v208 = vld [vmem:[%s193 + $0x60] sm:$0xff]
        %v209 = vld [vmem:[%s193 + $0x68] sm:$0xff]
        %v210 = vld [vmem:[%s193 + $0x70] sm:$0xff]
        %v211 = vld [vmem:[%s193 + $0x78] sm:$0xff]
        %v212 = vld [vmem:[%s193 + $0x80] sm:$0xff]
        %v213 = vld [vmem:[%s193 + $0x88] sm:$0xff]
        %v214 = vld [vmem:[%s193 + $0x90] sm:$0xff]
        %v215 = vld [vmem:[%s193 + $0x98] sm:$0xff]
        %v216 = vld [vmem:[%s193 + $0xa0] sm:$0xff]
        %v217 = vld [vmem:[%s193 + $0xa8] sm:$0xff]
        %v218 = vld [vmem:[%s193 + $0xb0] sm:$0xff]
        %v219 = vld [vmem:[%s193 + $0xb8] sm:$0xff]
        %v220 = vld [vmem:[%s193 + $0xc0] sm:$0xff]
        %v221 = vld [vmem:[%s193 + $0xc8] sm:$0xff]
        %v222 = vld [vmem:[%s193 + $0xd0] sm:$0xff]
        %v223 = vld [vmem:[%s193 + $0xd8] sm:$0xff]
        %v224 = vld [vmem:[%s193 + $0xe0] sm:$0xff]
        %v225 = vld [vmem:[%s193 + $0xe8] sm:$0xff]
        %v226 = vld [vmem:[%s193 + $0xf0] sm:$0xff]
        %v227 = vld [vmem:[%s193 + $0xf8] sm:$0xff]
        %v228 = vld [vmem:[%s193 + $0x100] sm:$0xff]
        %v229 = vld [vmem:[%s193 + $0x108] sm:$0xff]
        %v230 = vld [vmem:[%s193 + $0x110] sm:$0xff]
        %v231 = vld [vmem:[%s193 + $0x118] sm:$0xff]
        %v232 = vld [vmem:[%s193 + $0x120] sm:$0xff]
        %v233 = vld [vmem:[%s193 + $0x128] sm:$0xff]
        %v234 = vld [vmem:[%s193 + $0x130] sm:$0xff]
        %v235 = vld [vmem:[%s193 + $0x138] sm:$0xff]
        %v236 = vld [vmem:[%s193 + $0x140] sm:$0xff]
        %v237 = vld [vmem:[%s193 + $0x148] sm:$0xff]
        %v238 = vld [vmem:[%s193 + $0x150] sm:$0xff]
        %v239 = vld [vmem:[%s193 + $0x158] sm:$0xff]
        %v240 = vld [vmem:[%s193 + $0x160] sm:$0xff]
        %v241 = vld [vmem:[%s193 + $0x168] sm:$0xff]
        %v242 = vld [vmem:[%s193 + $0x170] sm:$0xff]
        %v243 = vld [vmem:[%s193 + $0x178] sm:$0xff]
        %v244 = vld [vmem:[%s193 + $0x180] sm:$0xff]
        %v245 = vld [vmem:[%s193 + $0x188] sm:$0xff]
        %v246 = vld [vmem:[%s193 + $0x190] sm:$0xff]
        %v247 = vld [vmem:[%s193 + $0x198] sm:$0xff]
        %v248 = vld [vmem:[%s193 + $0x1a0] sm:$0xff]
        %v249 = vld [vmem:[%s193 + $0x1a8] sm:$0xff]
        %v250 = vld [vmem:[%s193 + $0x1b0] sm:$0xff]
        %v251 = vld [vmem:[%s193 + $0x1b8] sm:$0xff]
        %v252 = vld [vmem:[%s193 + $0x1c0] sm:$0xff]
        %v253 = vld [vmem:[%s193 + $0x1c8] sm:$0xff]
        %v254 = vld [vmem:[%s193 + $0x1d0] sm:$0xff]
        %v255 = vld [vmem:[%s193 + $0x1d8] sm:$0xff]
        %v256 = vld [vmem:[%s193 + $0x1e0] sm:$0xff]
        %v257 = vld [vmem:[%s193 + $0x1e8] sm:$0xff]
        %v258 = vld [vmem:[%s193 + $0x1f0] sm:$0xff]
        %v259 = vld [vmem:[%s193 + $0x1f8] sm:$0xff]
        %v260 = vld [vmem:[%s193 + $0x200] sm:$0xff]
        %v261 = vld [vmem:[%s193 + $0x208] sm:$0xff]
        %v262 = vld [vmem:[%s193 + $0x210] sm:$0xff]
        %v263 = vld [vmem:[%s193 + $0x218] sm:$0xff]
        %v264 = vld [vmem:[%s193 + $0x220] sm:$0xff]
        %v265 = vld [vmem:[%s193 + $0x228] sm:$0xff]
        %v266 = vld [vmem:[%s193 + $0x230] sm:$0xff]
        %v267 = vld [vmem:[%s193 + $0x238] sm:$0xff]
        %v268 = vld [vmem:[%s193 + $0x240] sm:$0xff]
        %v269 = vld [vmem:[%s193 + $0x248] sm:$0xff]
        %v270 = vld [vmem:[%s193 + $0x250] sm:$0xff]
        %v271 = vld [vmem:[%s193 + $0x258] sm:$0xff]
        %v272 = vld [vmem:[%s193 + $0x260] sm:$0xff]
        %v273 = vld [vmem:[%s193 + $0x268] sm:$0xff]
        %v274 = vld [vmem:[%s193 + $0x270] sm:$0xff]
        %v275 = vld [vmem:[%s193 + $0x278] sm:$0xff]
        %v276 = vld [vmem:[%s193 + $0x280] sm:$0xff]
        %v277 = vld [vmem:[%s193 + $0x288] sm:$0xff]
        %v278 = vld [vmem:[%s193 + $0x290] sm:$0xff]
        %v279 = vld [vmem:[%s193 + $0x298] sm:$0xff]
        %v280 = vld [vmem:[%s193 + $0x2a0] sm:$0xff]
        %v281 = vld [vmem:[%s193 + $0x2a8] sm:$0xff]
        %v282 = vld [vmem:[%s193 + $0x2b0] sm:$0xff]
        %v283 = vld [vmem:[%s193 + $0x2b8] sm:$0xff]
        %v284 = vld [vmem:[%s193 + $0x2c0] sm:$0xff]
        %v285 = vld [vmem:[%s193 + $0x2c8] sm:$0xff]
        %v286 = vld [vmem:[%s193 + $0x2d0] sm:$0xff]
        %v287 = vld [vmem:[%s193 + $0x2d8] sm:$0xff]
        %v288 = vld [vmem:[%s193 + $0x2e0] sm:$0xff]
        %v289 = vld [vmem:[%s193 + $0x2e8] sm:$0xff]
        %v290 = vld [vmem:[%s193 + $0x2f0] sm:$0xff]
        %v291 = vld [vmem:[%s193 + $0x2f8] sm:$0xff]
        %v292 = vld [vmem:[%s193 + $0x300] sm:$0xff]
        %v293 = vld [vmem:[%s193 + $0x308] sm:$0xff]
        %v294 = vld [vmem:[%s193 + $0x310] sm:$0xff]
        %v295 = vld [vmem:[%s193 + $0x318] sm:$0xff]
        %v296 = vld [vmem:[%s193 + $0x320] sm:$0xff]
        %v297 = vld [vmem:[%s193 + $0x328] sm:$0xff]
        %v298 = vld [vmem:[%s193 + $0x330] sm:$0xff]
        %v299 = vld [vmem:[%s193 + $0x338] sm:$0xff]
        %v300 = vld [vmem:[%s193 + $0x340] sm:$0xff]
        %v301 = vld [vmem:[%s193 + $0x348] sm:$0xff]
        %v302 = vld [vmem:[%s193 + $0x350] sm:$0xff]
        %v303 = vld [vmem:[%s193 + $0x358] sm:$0xff]
        %v304 = vld [vmem:[%s193 + $0x360] sm:$0xff]
        %v305 = vld [vmem:[%s193 + $0x368] sm:$0xff]
        %v306 = vld [vmem:[%s193 + $0x370] sm:$0xff]
        %v307 = vld [vmem:[%s193 + $0x378] sm:$0xff]
        %v308 = vld [vmem:[%s193 + $0x380] sm:$0xff]
        %v309 = vld [vmem:[%s193 + $0x388] sm:$0xff]
        %v310 = vld [vmem:[%s193 + $0x390] sm:$0xff]
        %v311 = vld [vmem:[%s193 + $0x398] sm:$0xff]
        %v312 = vld [vmem:[%s193 + $0x3a0] sm:$0xff]
        %v313 = vld [vmem:[%s193 + $0x3a8] sm:$0xff]
        %v314 = vld [vmem:[%s193 + $0x3b0] sm:$0xff]
        %v315 = vld [vmem:[%s193 + $0x3b8] sm:$0xff]
        %v316 = vld [vmem:[%s193 + $0x3c0] sm:$0xff]
        %v317 = vld [vmem:[%s193 + $0x3c8] sm:$0xff]
        %v318 = vld [vmem:[%s193 + $0x3d0] sm:$0xff]
        %v319 = vld [vmem:[%s193 + $0x3d8] sm:$0xff]
        %v320 = vld [vmem:[%s193 + $0x3e0] sm:$0xff]
        %v321 = vld [vmem:[%s193 + $0x3e8] sm:$0xff]
        %v322 = vld [vmem:[%s193 + $0x3f0] sm:$0xff]
        %v323 = vld [vmem:[%s193 + $0x3f8] sm:$0xff]
        %v324 = vld [vmem:[%s1] sm:$0xff]
        %v325 = vld [vmem:[%s1 + $0x8] sm:$0xff]
        %v326 = vld [vmem:[%s1 + $0x10] sm:$0xff]
        %v327 = vld [vmem:[%s1 + $0x18] sm:$0xff]
        %v328 = vld [vmem:[%s1 + $0x20] sm:$0xff]
        %v329 = vld [vmem:[%s1 + $0x28] sm:$0xff]
        %v330 = vld [vmem:[%s1 + $0x30] sm:$0xff]
        %v331 = vld [vmem:[%s1 + $0x38] sm:$0xff]
        %v332 = vld [vmem:[%s1 + $0x40] sm:$0xff]
        %v333 = vld [vmem:[%s1 + $0x48] sm:$0xff]
        %v334 = vld [vmem:[%s1 + $0x50] sm:$0xff]
        %v335 = vld [vmem:[%s1 + $0x58] sm:$0xff]
        %v336 = vld [vmem:[%s1 + $0x60] sm:$0xff]
        %v337 = vld [vmem:[%s1 + $0x68] sm:$0xff]
        %v338 = vld [vmem:[%s1 + $0x70] sm:$0xff]
        %v339 = vld [vmem:[%s1 + $0x78] sm:$0xff]
        %v340 = vld [vmem:[%s2] sm:$0x1]
        %v342 = vlaneseq
        %v343 = vshrl.u32 %v342, 7
        %v344 = vsub.s32 0, %v343
        %v345 = vrot.slane %v340, %v344
        %347 = vxpose.xlu0.b32.start [1/16] %v196, 128
        %348 = vxpose.xlu0.b32.cont [2/16] %v204, 128
        %349 = vxpose.xlu0.b32.cont [3/16] %v212, 128
        %350 = vxpose.xlu0.b32.cont [4/16] %v220, 128
        %351 = vxpose.xlu0.b32.cont [5/16] %v228, 128
        %352 = vxpose.xlu0.b32.cont [6/16] %v236, 128
        %353 = vxpose.xlu0.b32.cont [7/16] %v244, 128
        %354 = vxpose.xlu0.b32.cont [8/16] %v252, 128
        %355 = vxpose.xlu0.b32.cont [9/16] %v260, 128
        %356 = vxpose.xlu0.b32.cont [10/16] %v268, 128
        %357 = vxpose.xlu0.b32.cont [11/16] %v276, 128
        %358 = vxpose.xlu0.b32.cont [12/16] %v284, 128
        %359 = vxpose.xlu0.b32.cont [13/16] %v292, 128
        %360 = vxpose.xlu0.b32.cont [14/16] %v300, 128
        %361 = vxpose.xlu0.b32.cont [15/16] %v308, 128
        %362 = vxpose.xlu0.b32.end [16/16] %v316, 128
        %v363 = vpop.trf.xlu0
        %v364 = vpop.trf.xlu0
        %v365 = vpop.trf.xlu0
        %v366 = vpop.trf.xlu0
        %v367 = vpop.trf.xlu0
        %v368 = vpop.trf.xlu0
        %v369 = vpop.trf.xlu0
        %v370 = vpop.trf.xlu0
        %v371 = vpop.trf.xlu0
        %v372 = vpop.trf.xlu0
        %v373 = vpop.trf.xlu0
        %v374 = vpop.trf.xlu0
        %v375 = vpop.trf.xlu0
        %v376 = vpop.trf.xlu0
        %v377 = vpop.trf.xlu0
        %v378 = vpop.trf.xlu0
        %379 = vxpose.xlu0.b32.start [1/16] %v197, 128
        %380 = vxpose.xlu0.b32.cont [2/16] %v205, 128
        %381 = vxpose.xlu0.b32.cont [3/16] %v213, 128
        %382 = vxpose.xlu0.b32.cont [4/16] %v221, 128
        %383 = vxpose.xlu0.b32.cont [5/16] %v229, 128
        %384 = vxpose.xlu0.b32.cont [6/16] %v237, 128
        %385 = vxpose.xlu0.b32.cont [7/16] %v245, 128
        %386 = vxpose.xlu0.b32.cont [8/16] %v253, 128
        %387 = vxpose.xlu0.b32.cont [9/16] %v261, 128
        %388 = vxpose.xlu0.b32.cont [10/16] %v269, 128
        %389 = vxpose.xlu0.b32.cont [11/16] %v277, 128
        %390 = vxpose.xlu0.b32.cont [12/16] %v285, 128
        %391 = vxpose.xlu0.b32.cont [13/16] %v293, 128
        %392 = vxpose.xlu0.b32.cont [14/16] %v301, 128
        %393 = vxpose.xlu0.b32.cont [15/16] %v309, 128
        %394 = vxpose.xlu0.b32.end [16/16] %v317, 128
        %v395 = vpop.trf.xlu0
        %v396 = vpop.trf.xlu0
        %v397 = vpop.trf.xlu0
        %v398 = vpop.trf.xlu0
        %v399 = vpop.trf.xlu0
        %v400 = vpop.trf.xlu0
        %v401 = vpop.trf.xlu0
        %v402 = vpop.trf.xlu0
        %v403 = vpop.trf.xlu0
        %v404 = vpop.trf.xlu0
        %v405 = vpop.trf.xlu0
        %v406 = vpop.trf.xlu0
        %v407 = vpop.trf.xlu0
        %v408 = vpop.trf.xlu0
        %v409 = vpop.trf.xlu0
        %v410 = vpop.trf.xlu0
        %411 = vxpose.xlu0.b32.start [1/16] %v198, 128
        %412 = vxpose.xlu0.b32.cont [2/16] %v206, 128
        %413 = vxpose.xlu0.b32.cont [3/16] %v214, 128
        %414 = vxpose.xlu0.b32.cont [4/16] %v222, 128
        %415 = vxpose.xlu0.b32.cont [5/16] %v230, 128
        %416 = vxpose.xlu0.b32.cont [6/16] %v238, 128
        %417 = vxpose.xlu0.b32.cont [7/16] %v246, 128
        %418 = vxpose.xlu0.b32.cont [8/16] %v254, 128
        %419 = vxpose.xlu0.b32.cont [9/16] %v262, 128
        %420 = vxpose.xlu0.b32.cont [10/16] %v270, 128
        %421 = vxpose.xlu0.b32.cont [11/16] %v278, 128
        %422 = vxpose.xlu0.b32.cont [12/16] %v286, 128
        %423 = vxpose.xlu0.b32.cont [13/16] %v294, 128
        %424 = vxpose.xlu0.b32.cont [14/16] %v302, 128
        %425 = vxpose.xlu0.b32.cont [15/16] %v310, 128
        %426 = vxpose.xlu0.b32.end [16/16] %v318, 128
        %v427 = vpop.trf.xlu0
        %v428 = vpop.trf.xlu0
        %v429 = vpop.trf.xlu0
        %v430 = vpop.trf.xlu0
        %v431 = vpop.trf.xlu0
        %v432 = vpop.trf.xlu0
        %v433 = vpop.trf.xlu0
        %v434 = vpop.trf.xlu0
        %v435 = vpop.trf.xlu0
        %v436 = vpop.trf.xlu0
        %v437 = vpop.trf.xlu0
        %v438 = vpop.trf.xlu0
        %v439 = vpop.trf.xlu0
        %v440 = vpop.trf.xlu0
        %v441 = vpop.trf.xlu0
        %v442 = vpop.trf.xlu0
        %443 = vxpose.xlu0.b32.start [1/16] %v199, 128
        %444 = vxpose.xlu0.b32.cont [2/16] %v207, 128
        %445 = vxpose.xlu0.b32.cont [3/16] %v215, 128
        %446 = vxpose.xlu0.b32.cont [4/16] %v223, 128
        %447 = vxpose.xlu0.b32.cont [5/16] %v231, 128
        %448 = vxpose.xlu0.b32.cont [6/16] %v239, 128
        %449 = vxpose.xlu0.b32.cont [7/16] %v247, 128
        %450 = vxpose.xlu0.b32.cont [8/16] %v255, 128
        %451 = vxpose.xlu0.b32.cont [9/16] %v263, 128
        %452 = vxpose.xlu0.b32.cont [10/16] %v271, 128
        %453 = vxpose.xlu0.b32.cont [11/16] %v279, 128
        %454 = vxpose.xlu0.b32.cont [12/16] %v287, 128
        %455 = vxpose.xlu0.b32.cont [13/16] %v295, 128
        %456 = vxpose.xlu0.b32.cont [14/16] %v303, 128
        %457 = vxpose.xlu0.b32.cont [15/16] %v311, 128
        %458 = vxpose.xlu0.b32.end [16/16] %v319, 128
        %v459 = vpop.trf.xlu0
        %v460 = vpop.trf.xlu0
        %v461 = vpop.trf.xlu0
        %v462 = vpop.trf.xlu0
        %v463 = vpop.trf.xlu0
        %v464 = vpop.trf.xlu0
        %v465 = vpop.trf.xlu0
        %v466 = vpop.trf.xlu0
        %v467 = vpop.trf.xlu0
        %v468 = vpop.trf.xlu0
        %v469 = vpop.trf.xlu0
        %v470 = vpop.trf.xlu0
        %v471 = vpop.trf.xlu0
        %v472 = vpop.trf.xlu0
        %v473 = vpop.trf.xlu0
        %v474 = vpop.trf.xlu0
        %475 = vxpose.xlu0.b32.start [1/16] %v200, 128
        %476 = vxpose.xlu0.b32.cont [2/16] %v208, 128
        %477 = vxpose.xlu0.b32.cont [3/16] %v216, 128
        %478 = vxpose.xlu0.b32.cont [4/16] %v224, 128
        %479 = vxpose.xlu0.b32.cont [5/16] %v232, 128
        %480 = vxpose.xlu0.b32.cont [6/16] %v240, 128
        %481 = vxpose.xlu0.b32.cont [7/16] %v248, 128
        %482 = vxpose.xlu0.b32.cont [8/16] %v256, 128
        %483 = vxpose.xlu0.b32.cont [9/16] %v264, 128
        %484 = vxpose.xlu0.b32.cont [10/16] %v272, 128
        %485 = vxpose.xlu0.b32.cont [11/16] %v280, 128
        %486 = vxpose.xlu0.b32.cont [12/16] %v288, 128
        %487 = vxpose.xlu0.b32.cont [13/16] %v296, 128
        %488 = vxpose.xlu0.b32.cont [14/16] %v304, 128
        %489 = vxpose.xlu0.b32.cont [15/16] %v312, 128
        %490 = vxpose.xlu0.b32.end [16/16] %v320, 128
        %v491 = vpop.trf.xlu0
        %v492 = vpop.trf.xlu0
        %v493 = vpop.trf.xlu0
        %v494 = vpop.trf.xlu0
        %v495 = vpop.trf.xlu0
        %v496 = vpop.trf.xlu0
        %v497 = vpop.trf.xlu0
        %v498 = vpop.trf.xlu0
        %v499 = vpop.trf.xlu0
        %v500 = vpop.trf.xlu0
        %v501 = vpop.trf.xlu0
        %v502 = vpop.trf.xlu0
        %v503 = vpop.trf.xlu0
        %v504 = vpop.trf.xlu0
        %v505 = vpop.trf.xlu0
        %v506 = vpop.trf.xlu0
        %507 = vxpose.xlu0.b32.start [1/16] %v201, 128
        %508 = vxpose.xlu0.b32.cont [2/16] %v209, 128
        %509 = vxpose.xlu0.b32.cont [3/16] %v217, 128
        %510 = vxpose.xlu0.b32.cont [4/16] %v225, 128
        %511 = vxpose.xlu0.b32.cont [5/16] %v233, 128
        %512 = vxpose.xlu0.b32.cont [6/16] %v241, 128
        %513 = vxpose.xlu0.b32.cont [7/16] %v249, 128
        %514 = vxpose.xlu0.b32.cont [8/16] %v257, 128
        %515 = vxpose.xlu0.b32.cont [9/16] %v265, 128
        %516 = vxpose.xlu0.b32.cont [10/16] %v273, 128
        %517 = vxpose.xlu0.b32.cont [11/16] %v281, 128
        %518 = vxpose.xlu0.b32.cont [12/16] %v289, 128
        %519 = vxpose.xlu0.b32.cont [13/16] %v297, 128
        %520 = vxpose.xlu0.b32.cont [14/16] %v305, 128
        %521 = vxpose.xlu0.b32.cont [15/16] %v313, 128
        %522 = vxpose.xlu0.b32.end [16/16] %v321, 128
        %v523 = vpop.trf.xlu0
        %v524 = vpop.trf.xlu0
        %v525 = vpop.trf.xlu0
        %v526 = vpop.trf.xlu0
        %v527 = vpop.trf.xlu0
        %v528 = vpop.trf.xlu0
        %v529 = vpop.trf.xlu0
        %v530 = vpop.trf.xlu0
        %v531 = vpop.trf.xlu0
        %v532 = vpop.trf.xlu0
        %v533 = vpop.trf.xlu0
        %v534 = vpop.trf.xlu0
        %v535 = vpop.trf.xlu0
        %v536 = vpop.trf.xlu0
        %v537 = vpop.trf.xlu0
        %v538 = vpop.trf.xlu0
        %539 = vxpose.xlu0.b32.start [1/16] %v202, 128
        %540 = vxpose.xlu0.b32.cont [2/16] %v210, 128
        %541 = vxpose.xlu0.b32.cont [3/16] %v218, 128
        %542 = vxpose.xlu0.b32.cont [4/16] %v226, 128
        %543 = vxpose.xlu0.b32.cont [5/16] %v234, 128
        %544 = vxpose.xlu0.b32.cont [6/16] %v242, 128
        %545 = vxpose.xlu0.b32.cont [7/16] %v250, 128
        %546 = vxpose.xlu0.b32.cont [8/16] %v258, 128
        %547 = vxpose.xlu0.b32.cont [9/16] %v266, 128
        %548 = vxpose.xlu0.b32.cont [10/16] %v274, 128
        %549 = vxpose.xlu0.b32.cont [11/16] %v282, 128
        %550 = vxpose.xlu0.b32.cont [12/16] %v290, 128
        %551 = vxpose.xlu0.b32.cont [13/16] %v298, 128
        %552 = vxpose.xlu0.b32.cont [14/16] %v306, 128
        %553 = vxpose.xlu0.b32.cont [15/16] %v314, 128
        %554 = vxpose.xlu0.b32.end [16/16] %v322, 128
        %v555 = vpop.trf.xlu0
        %v556 = vpop.trf.xlu0
        %v557 = vpop.trf.xlu0
        %v558 = vpop.trf.xlu0
        %v559 = vpop.trf.xlu0
        %v560 = vpop.trf.xlu0
        %v561 = vpop.trf.xlu0
        %v562 = vpop.trf.xlu0
        %v563 = vpop.trf.xlu0
        %v564 = vpop.trf.xlu0
        %v565 = vpop.trf.xlu0
        %v566 = vpop.trf.xlu0
        %v567 = vpop.trf.xlu0
        %v568 = vpop.trf.xlu0
        %v569 = vpop.trf.xlu0
        %v570 = vpop.trf.xlu0
        %571 = vxpose.xlu0.b32.start [1/16] %v203, 128
        %572 = vxpose.xlu0.b32.cont [2/16] %v211, 128
        %573 = vxpose.xlu0.b32.cont [3/16] %v219, 128
        %574 = vxpose.xlu0.b32.cont [4/16] %v227, 128
        %575 = vxpose.xlu0.b32.cont [5/16] %v235, 128
        %576 = vxpose.xlu0.b32.cont [6/16] %v243, 128
        %577 = vxpose.xlu0.b32.cont [7/16] %v251, 128
        %578 = vxpose.xlu0.b32.cont [8/16] %v259, 128
        %579 = vxpose.xlu0.b32.cont [9/16] %v267, 128
        %580 = vxpose.xlu0.b32.cont [10/16] %v275, 128
        %581 = vxpose.xlu0.b32.cont [11/16] %v283, 128
        %582 = vxpose.xlu0.b32.cont [12/16] %v291, 128
        %583 = vxpose.xlu0.b32.cont [13/16] %v299, 128
        %584 = vxpose.xlu0.b32.cont [14/16] %v307, 128
        %585 = vxpose.xlu0.b32.cont [15/16] %v315, 128
        %586 = vxpose.xlu0.b32.end [16/16] %v323, 128
        %v587 = vpop.trf.xlu0
        %v588 = vpop.trf.xlu0
        %v589 = vpop.trf.xlu0
        %v590 = vpop.trf.xlu0
        %v591 = vpop.trf.xlu0
        %v592 = vpop.trf.xlu0
        %v593 = vpop.trf.xlu0
        %v594 = vpop.trf.xlu0
        %v595 = vpop.trf.xlu0
        %v596 = vpop.trf.xlu0
        %v597 = vpop.trf.xlu0
        %v598 = vpop.trf.xlu0
        %v599 = vpop.trf.xlu0
        %v600 = vpop.trf.xlu0
        %v601 = vpop.trf.xlu0
        %v602 = vpop.trf.xlu0
        %603 = vmatprep.subr.mxu0 0.0
        %604 = vmatpush1.msra.mxu0 %v324
        %605 = vmatprep.subr.mxu0 0.0
        %606 = vmatpush1.msra.mxu0 %v325
        %607 = vmatprep.subr.mxu0 0.0
        %608 = vmatpush1.msra.mxu0 %v326
        %609 = vmatprep.subr.mxu0 0.0
        %610 = vmatpush1.msra.mxu0 %v327
        %611 = vmatprep.subr.mxu0 0.0
        %612 = vmatpush1.msra.mxu0 %v328
        %613 = vmatprep.subr.mxu0 0.0
        %614 = vmatpush1.msra.mxu0 %v329
        %615 = vmatprep.subr.mxu0 0.0
        %616 = vmatpush1.msra.mxu0 %v330
        %617 = vmatprep.subr.mxu0 0.0
        %618 = vmatpush1.msra.mxu0 %v331
        %619 = vmatprep.subr.mxu0 0.0
        %620 = vmatpush1.msra.mxu0 %v332
        %621 = vmatprep.subr.mxu0 0.0
        %622 = vmatpush1.msra.mxu0 %v333
        %623 = vmatprep.subr.mxu0 0.0
        %624 = vmatpush1.msra.mxu0 %v334
        %625 = vmatprep.subr.mxu0 0.0
        %626 = vmatpush1.msra.mxu0 %v335
        %627 = vmatprep.subr.mxu0 0.0
        %628 = vmatpush1.msra.mxu0 %v336
        %629 = vmatprep.subr.mxu0 0.0
        %630 = vmatpush1.msra.mxu0 %v337
        %631 = vmatprep.subr.mxu0 0.0
        %632 = vmatpush1.msra.mxu0 %v338
        %633 = vmatprep.subr.mxu0 0.0
        %634 = vmatpush1.msra.mxu0 %v339
        %635 = vmatprep.subr.mxu0 0.0
        %636 = vmatpush1.msra.mxu0 0.0
        %637 = vmatprep.subr.mxu0 0.0
        %638 = vmatpush1.msra.mxu0 0.0
        %639 = vmatprep.subr.mxu0 0.0
        %640 = vmatpush1.msra.mxu0 0.0
        %641 = vmatprep.subr.mxu0 0.0
        %642 = vmatpush1.msra.mxu0 0.0
        %643 = vmatprep.subr.mxu0 0.0
        %644 = vmatpush1.msra.mxu0 0.0
        %645 = vmatprep.subr.mxu0 0.0
        %646 = vmatpush1.msra.mxu0 0.0
        %647 = vmatprep.subr.mxu0 0.0
        %648 = vmatpush1.msra.mxu0 0.0
        %649 = vmatprep.subr.mxu0 0.0
        %650 = vmatpush1.msra.mxu0 0.0
        %651 = vmatprep.subr.mxu0 0.0
        %652 = vmatpush1.msra.mxu0 0.0
        %653 = vmatprep.subr.mxu0 0.0
        %654 = vmatpush1.msra.mxu0 0.0
        %655 = vmatprep.subr.mxu0 0.0
        %656 = vmatpush1.msra.mxu0 0.0
        %657 = vmatprep.subr.mxu0 0.0
        %658 = vmatpush1.msra.mxu0 0.0
        %659 = vmatprep.subr.mxu0 0.0
        %660 = vmatpush1.msra.mxu0 0.0
        %661 = vmatprep.subr.mxu0 0.0
        %662 = vmatpush1.msra.mxu0 0.0
        %663 = vmatprep.subr.mxu0 0.0
        %664 = vmatpush1.msra.mxu0 0.0
        %665 = vmatprep.subr.mxu0 0.0
        %666 = vmatpush1.msra.mxu0 0.0
        %667 = vmatprep.mubr.f32.mxu0 0.0
        %668 = vmatmul.mubr.f32.gmra.mrb[0].mxu0 %v363
        %v669 = vpop.f32.mrb[0].mxu0
        %v670 = vadd.f32 %v345, %v669
        %v671 = vpop.f32.mrb[0].mxu0
        %672 = vmatprep.mubr.f32.mxu0 0.0
        %673 = vmatmul.mubr.f32.gmra.mrb[0].mxu0 %v364
        %v674 = vpop.f32.mrb[0].mxu0
        %v675 = vadd.f32 %v345, %v674
        %v676 = vpop.f32.mrb[0].mxu0
        %677 = vmatprep.mubr.f32.mxu0 0.0
        %678 = vmatmul.mubr.f32.gmra.mrb[0].mxu0 %v365
        %v679 = vpop.f32.mrb[0].mxu0
        %v680 = vadd.f32 %v345, %v679
        %v681 = vpop.f32.mrb[0].mxu0
        %682 = vmatprep.mubr.f32.mxu0 0.0
        %683 = vmatmul.mubr.f32.gmra.mrb[0].mxu0 %v366
        %v684 = vpop.f32.mrb[0].mxu0
        %v685 = vadd.f32 %v345, %v684
        %v686 = vpop.f32.mrb[0].mxu0
        %687 = vmatprep.mubr.f32.mxu0 0.0
        %688 = vmatmul.mubr.f32.gmra.mrb[0].mxu0 %v367
        %v689 = vpop.f32.mrb[0].mxu0
        %v690 = vadd.f32 %v345, %v689
        %v691 = vpop.f32.mrb[0].mxu0
        %692 = vmatprep.mubr.f32.mxu0 0.0
        %693 = vmatmul.mubr.f32.gmra.mrb[0].mxu0 %v368
        %v694 = vpop.f32.mrb[0].mxu0
        %v695 = vadd.f32 %v345, %v694
        %v696 = vpop.f32.mrb[0].mxu0
        %697 = vmatprep.mubr.f32.mxu0 0.0
        %698 = vmatmul.mubr.f32.gmra.mrb[0].mxu0 %v369
        %v699 = vpop.f32.mrb[0].mxu0
        %v700 = vadd.f32 %v345, %v699
        %v701 = vpop.f32.mrb[0].mxu0
        %702 = vmatprep.mubr.f32.mxu0 0.0
        %703 = vmatmul.mubr.f32.gmra.mrb[0].mxu0 %v370
        %v704 = vpop.f32.mrb[0].mxu0
        %v705 = vadd.f32 %v345, %v704
        %v706 = vpop.f32.mrb[0].mxu0
        %707 = vmatprep.mubr.f32.mxu0 0.0
        %708 = vmatmul.mubr.f32.gmra.mrb[0].mxu0 %v371
        %v709 = vpop.f32.mrb[0].mxu0
        %v710 = vadd.f32 %v345, %v709
        %v711 = vpop.f32.mrb[0].mxu0
        %712 = vmatprep.mubr.f32.mxu0 0.0
        %713 = vmatmul.mubr.f32.gmra.mrb[0].mxu0 %v372
        %v714 = vpop.f32.mrb[0].mxu0
        %v715 = vadd.f32 %v345, %v714
        %v716 = vpop.f32.mrb[0].mxu0
        %717 = vmatprep.mubr.f32.mxu0 0.0
        %718 = vmatmul.mubr.f32.gmra.mrb[0].mxu0 %v373
        %v719 = vpop.f32.mrb[0].mxu0
        %v720 = vadd.f32 %v345, %v719
        %v721 = vpop.f32.mrb[0].mxu0
        %722 = vmatprep.mubr.f32.mxu0 0.0
        %723 = vmatmul.mubr.f32.gmra.mrb[0].mxu0 %v374
        %v724 = vpop.f32.mrb[0].mxu0
        %v725 = vadd.f32 %v345, %v724
        %v726 = vpop.f32.mrb[0].mxu0
        %727 = vmatprep.mubr.f32.mxu0 0.0
        %728 = vmatmul.mubr.f32.gmra.mrb[0].mxu0 %v375
        %v729 = vpop.f32.mrb[0].mxu0
        %v730 = vadd.f32 %v345, %v729
        %v731 = vpop.f32.mrb[0].mxu0
        %732 = vmatprep.mubr.f32.mxu0 0.0
        %733 = vmatmul.mubr.f32.gmra.mrb[0].mxu0 %v376
        %v734 = vpop.f32.mrb[0].mxu0
        %v735 = vadd.f32 %v345, %v734
        %v736 = vpop.f32.mrb[0].mxu0
        %737 = vmatprep.mubr.f32.mxu0 0.0
        %738 = vmatmul.mubr.f32.gmra.mrb[0].mxu0 %v377
        %v739 = vpop.f32.mrb[0].mxu0
        %v740 = vadd.f32 %v345, %v739
        %v741 = vpop.f32.mrb[0].mxu0
        %742 = vmatprep.mubr.f32.mxu0 0.0
        %743 = vmatmul.mubr.f32.gmra.mrb[0].mxu0 %v378
        %v744 = vpop.f32.mrb[0].mxu0
        %v745 = vadd.f32 %v345, %v744
        %v746 = vpop.f32.mrb[0].mxu0
        %747 = vmatprep.mubr.f32.mxu0 0.0
        %748 = vmatmul.mubr.f32.gmra.mrb[0].mxu0 %v395
        %v749 = vpop.f32.mrb[0].mxu0
        %v750 = vadd.f32 %v345, %v749
        %v751 = vpop.f32.mrb[0].mxu0
        %752 = vmatprep.mubr.f32.mxu0 0.0
        %753 = vmatmul.mubr.f32.gmra.mrb[0].mxu0 %v396
        %v754 = vpop.f32.mrb[0].mxu0
        %v755 = vadd.f32 %v345, %v754
        %v756 = vpop.f32.mrb[0].mxu0
        %757 = vmatprep.mubr.f32.mxu0 0.0
        %758 = vmatmul.mubr.f32.gmra.mrb[0].mxu0 %v397
        %v759 = vpop.f32.mrb[0].mxu0
        %v760 = vadd.f32 %v345, %v759
        %v761 = vpop.f32.mrb[0].mxu0
        %762 = vmatprep.mubr.f32.mxu0 0.0
        %763 = vmatmul.mubr.f32.gmra.mrb[0].mxu0 %v398
        %v764 = vpop.f32.mrb[0].mxu0
        %v765 = vadd.f32 %v345, %v764
        %v766 = vpop.f32.mrb[0].mxu0
        %767 = vmatprep.mubr.f32.mxu0 0.0
        %768 = vmatmul.mubr.f32.gmra.mrb[0].mxu0 %v399
        %v769 = vpop.f32.mrb[0].mxu0
        %v770 = vadd.f32 %v345, %v769
        %v771 = vpop.f32.mrb[0].mxu0
        %772 = vmatprep.mubr.f32.mxu0 0.0
        %773 = vmatmul.mubr.f32.gmra.mrb[0].mxu0 %v400
        %v774 = vpop.f32.mrb[0].mxu0
        %v775 = vadd.f32 %v345, %v774
        %v776 = vpop.f32.mrb[0].mxu0
        %777 = vmatprep.mubr.f32.mxu0 0.0
        %778 = vmatmul.mubr.f32.gmra.mrb[0].mxu0 %v401
        %v779 = vpop.f32.mrb[0].mxu0
        %v780 = vadd.f32 %v345, %v779
        %v781 = vpop.f32.mrb[0].mxu0
        %782 = vmatprep.mubr.f32.mxu0 0.0
        %783 = vmatmul.mubr.f32.gmra.mrb[0].mxu0 %v402
        %v784 = vpop.f32.mrb[0].mxu0
        %v785 = vadd.f32 %v345, %v784
        %v786 = vpop.f32.mrb[0].mxu0
        %787 = vmatprep.mubr.f32.mxu0 0.0
        %788 = vmatmul.mubr.f32.gmra.mrb[0].mxu0 %v403
        %v789 = vpop.f32.mrb[0].mxu0
        %v790 = vadd.f32 %v345, %v789
        %v791 = vpop.f32.mrb[0].mxu0
        %792 = vmatprep.mubr.f32.mxu0 0.0
        %793 = vmatmul.mubr.f32.gmra.mrb[0].mxu0 %v404
        %v794 = vpop.f32.mrb[0].mxu0
        %v795 = vadd.f32 %v345, %v794
        %v796 = vpop.f32.mrb[0].mxu0
        %797 = vmatprep.mubr.f32.mxu0 0.0
        %798 = vmatmul.mubr.f32.gmra.mrb[0].mxu0 %v405
        %v799 = vpop.f32.mrb[0].mxu0
        %v800 = vadd.f32 %v345, %v799
        %v801 = vpop.f32.mrb[0].mxu0
        %802 = vmatprep.mubr.f32.mxu0 0.0
        %803 = vmatmul.mubr.f32.gmra.mrb[0].mxu0 %v406
        %v804 = vpop.f32.mrb[0].mxu0
        %v805 = vadd.f32 %v345, %v804
        %v806 = vpop.f32.mrb[0].mxu0
        %807 = vmatprep.mubr.f32.mxu0 0.0
        %808 = vmatmul.mubr.f32.gmra.mrb[0].mxu0 %v407
        %v809 = vpop.f32.mrb[0].mxu0
        %v810 = vadd.f32 %v345, %v809
        %v811 = vpop.f32.mrb[0].mxu0
        %812 = vmatprep.mubr.f32.mxu0 0.0
        %813 = vmatmul.mubr.f32.gmra.mrb[0].mxu0 %v408
        %v814 = vpop.f32.mrb[0].mxu0
        %v815 = vadd.f32 %v345, %v814
        %v816 = vpop.f32.mrb[0].mxu0
        %817 = vmatprep.mubr.f32.mxu0 0.0
        %818 = vmatmul.mubr.f32.gmra.mrb[0].mxu0 %v409
        %v819 = vpop.f32.mrb[0].mxu0
        %v820 = vadd.f32 %v345, %v819
        %v821 = vpop.f32.mrb[0].mxu0
        %822 = vmatprep.mubr.f32.mxu0 0.0
        %823 = vmatmul.mubr.f32.gmra.mrb[0].mxu0 %v410
        %v824 = vpop.f32.mrb[0].mxu0
        %v825 = vadd.f32 %v345, %v824
        %v826 = vpop.f32.mrb[0].mxu0
        %827 = vmatprep.mubr.f32.mxu0 0.0
        %828 = vmatmul.mubr.f32.gmra.mrb[0].mxu0 %v427
        %v829 = vpop.f32.mrb[0].mxu0
        %v830 = vadd.f32 %v345, %v829
        %v831 = vpop.f32.mrb[0].mxu0
        %832 = vmatprep.mubr.f32.mxu0 0.0
        %833 = vmatmul.mubr.f32.gmra.mrb[0].mxu0 %v428
        %v834 = vpop.f32.mrb[0].mxu0
        %v835 = vadd.f32 %v345, %v834
        %v836 = vpop.f32.mrb[0].mxu0
        %837 = vmatprep.mubr.f32.mxu0 0.0
        %838 = vmatmul.mubr.f32.gmra.mrb[0].mxu0 %v429
        %v839 = vpop.f32.mrb[0].mxu0
        %v840 = vadd.f32 %v345, %v839
        %v841 = vpop.f32.mrb[0].mxu0
        %842 = vmatprep.mubr.f32.mxu0 0.0
        %843 = vmatmul.mubr.f32.gmra.mrb[0].mxu0 %v430
        %v844 = vpop.f32.mrb[0].mxu0
        %v845 = vadd.f32 %v345, %v844
        %v846 = vpop.f32.mrb[0].mxu0
        %847 = vmatprep.mubr.f32.mxu0 0.0
        %848 = vmatmul.mubr.f32.gmra.mrb[0].mxu0 %v431
        %v849 = vpop.f32.mrb[0].mxu0
        %v850 = vadd.f32 %v345, %v849
        %v851 = vpop.f32.mrb[0].mxu0
        %852 = vmatprep.mubr.f32.mxu0 0.0
        %853 = vmatmul.mubr.f32.gmra.mrb[0].mxu0 %v432
        %v854 = vpop.f32.mrb[0].mxu0
        %v855 = vadd.f32 %v345, %v854
        %v856 = vpop.f32.mrb[0].mxu0
        %857 = vmatprep.mubr.f32.mxu0 0.0
        %858 = vmatmul.mubr.f32.gmra.mrb[0].mxu0 %v433
        %v859 = vpop.f32.mrb[0].mxu0
        %v860 = vadd.f32 %v345, %v859
        %v861 = vpop.f32.mrb[0].mxu0
        %862 = vmatprep.mubr.f32.mxu0 0.0
        %863 = vmatmul.mubr.f32.gmra.mrb[0].mxu0 %v434
        %v864 = vpop.f32.mrb[0].mxu0
        %v865 = vadd.f32 %v345, %v864
        %v866 = vpop.f32.mrb[0].mxu0
        %867 = vmatprep.mubr.f32.mxu0 0.0
        %868 = vmatmul.mubr.f32.gmra.mrb[0].mxu0 %v435
        %v869 = vpop.f32.mrb[0].mxu0
        %v870 = vadd.f32 %v345, %v869
        %v871 = vpop.f32.mrb[0].mxu0
        %872 = vmatprep.mubr.f32.mxu0 0.0
        %873 = vmatmul.mubr.f32.gmra.mrb[0].mxu0 %v436
        %v874 = vpop.f32.mrb[0].mxu0
        %v875 = vadd.f32 %v345, %v874
        %v876 = vpop.f32.mrb[0].mxu0
        %877 = vmatprep.mubr.f32.mxu0 0.0
        %878 = vmatmul.mubr.f32.gmra.mrb[0].mxu0 %v437
        %v879 = vpop.f32.mrb[0].mxu0
        %v880 = vadd.f32 %v345, %v879
        %v881 = vpop.f32.mrb[0].mxu0
        %882 = vmatprep.mubr.f32.mxu0 0.0
        %883 = vmatmul.mubr.f32.gmra.mrb[0].mxu0 %v438
        %v884 = vpop.f32.mrb[0].mxu0
        %v885 = vadd.f32 %v345, %v884
        %v886 = vpop.f32.mrb[0].mxu0
        %887 = vmatprep.mubr.f32.mxu0 0.0
        %888 = vmatmul.mubr.f32.gmra.mrb[0].mxu0 %v439
        %v889 = vpop.f32.mrb[0].mxu0
        %v890 = vadd.f32 %v345, %v889
        %v891 = vpop.f32.mrb[0].mxu0
        %892 = vmatprep.mubr.f32.mxu0 0.0
        %893 = vmatmul.mubr.f32.gmra.mrb[0].mxu0 %v440
        %v894 = vpop.f32.mrb[0].mxu0
        %v895 = vadd.f32 %v345, %v894
        %v896 = vpop.f32.mrb[0].mxu0
        %897 = vmatprep.mubr.f32.mxu0 0.0
        %898 = vmatmul.mubr.f32.gmra.mrb[0].mxu0 %v441
        %v899 = vpop.f32.mrb[0].mxu0
        %v900 = vadd.f32 %v345, %v899
        %v901 = vpop.f32.mrb[0].mxu0
        %902 = vmatprep.mubr.f32.mxu0 0.0
        %903 = vmatmul.mubr.f32.gmra.mrb[0].mxu0 %v442
        %v904 = vpop.f32.mrb[0].mxu0
        %v905 = vadd.f32 %v345, %v904
        %v906 = vpop.f32.mrb[0].mxu0
        %907 = vmatprep.mubr.f32.mxu0 0.0
        %908 = vmatmul.mubr.f32.gmra.mrb[0].mxu0 %v459
        %v909 = vpop.f32.mrb[0].mxu0
        %v910 = vadd.f32 %v345, %v909
        %v911 = vpop.f32.mrb[0].mxu0
        %912 = vmatprep.mubr.f32.mxu0 0.0
        %913 = vmatmul.mubr.f32.gmra.mrb[0].mxu0 %v460
        %v914 = vpop.f32.mrb[0].mxu0
        %v915 = vadd.f32 %v345, %v914
        %v916 = vpop.f32.mrb[0].mxu0
        %917 = vmatprep.mubr.f32.mxu0 0.0
        %918 = vmatmul.mubr.f32.gmra.mrb[0].mxu0 %v461
        %v919 = vpop.f32.mrb[0].mxu0
        %v920 = vadd.f32 %v345, %v919
        %v921 = vpop.f32.mrb[0].mxu0
        %922 = vmatprep.mubr.f32.mxu0 0.0
        %923 = vmatmul.mubr.f32.gmra.mrb[0].mxu0 %v462
        %v924 = vpop.f32.mrb[0].mxu0
        %v925 = vadd.f32 %v345, %v924
        %v926 = vpop.f32.mrb[0].mxu0
        %927 = vmatprep.mubr.f32.mxu0 0.0
        %928 = vmatmul.mubr.f32.gmra.mrb[0].mxu0 %v463
        %v929 = vpop.f32.mrb[0].mxu0
        %v930 = vadd.f32 %v345, %v929
        %v931 = vpop.f32.mrb[0].mxu0
        %932 = vmatprep.mubr.f32.mxu0 0.0
        %933 = vmatmul.mubr.f32.gmra.mrb[0].mxu0 %v464
        %v934 = vpop.f32.mrb[0].mxu0
        %v935 = vadd.f32 %v345, %v934
        %v936 = vpop.f32.mrb[0].mxu0
        %937 = vmatprep.mubr.f32.mxu0 0.0
        %938 = vmatmul.mubr.f32.gmra.mrb[0].mxu0 %v465
        %v939 = vpop.f32.mrb[0].mxu0
        %v940 = vadd.f32 %v345, %v939
        %v941 = vpop.f32.mrb[0].mxu0
        %942 = vmatprep.mubr.f32.mxu0 0.0
        %943 = vmatmul.mubr.f32.gmra.mrb[0].mxu0 %v466
        %v944 = vpop.f32.mrb[0].mxu0
        %v945 = vadd.f32 %v345, %v944
        %v946 = vpop.f32.mrb[0].mxu0
        %947 = vmatprep.mubr.f32.mxu0 0.0
        %948 = vmatmul.mubr.f32.gmra.mrb[0].mxu0 %v467
        %v949 = vpop.f32.mrb[0].mxu0
        %v950 = vadd.f32 %v345, %v949
        %v951 = vpop.f32.mrb[0].mxu0
        %952 = vmatprep.mubr.f32.mxu0 0.0
        %953 = vmatmul.mubr.f32.gmra.mrb[0].mxu0 %v468
        %v954 = vpop.f32.mrb[0].mxu0
        %v955 = vadd.f32 %v345, %v954
        %v956 = vpop.f32.mrb[0].mxu0
        %957 = vmatprep.mubr.f32.mxu0 0.0
        %958 = vmatmul.mubr.f32.gmra.mrb[0].mxu0 %v469
        %v959 = vpop.f32.mrb[0].mxu0
        %v960 = vadd.f32 %v345, %v959
        %v961 = vpop.f32.mrb[0].mxu0
        %962 = vmatprep.mubr.f32.mxu0 0.0
        %963 = vmatmul.mubr.f32.gmra.mrb[0].mxu0 %v470
        %v964 = vpop.f32.mrb[0].mxu0
        %v965 = vadd.f32 %v345, %v964
        %v966 = vpop.f32.mrb[0].mxu0
        %967 = vmatprep.mubr.f32.mxu0 0.0
        %968 = vmatmul.mubr.f32.gmra.mrb[0].mxu0 %v471
        %v969 = vpop.f32.mrb[0].mxu0
        %v970 = vadd.f32 %v345, %v969
        %v971 = vpop.f32.mrb[0].mxu0
        %972 = vmatprep.mubr.f32.mxu0 0.0
        %973 = vmatmul.mubr.f32.gmra.mrb[0].mxu0 %v472
        %v974 = vpop.f32.mrb[0].mxu0
        %v975 = vadd.f32 %v345, %v974
        %v976 = vpop.f32.mrb[0].mxu0
        %977 = vmatprep.mubr.f32.mxu0 0.0
        %978 = vmatmul.mubr.f32.gmra.mrb[0].mxu0 %v473
        %v979 = vpop.f32.mrb[0].mxu0
        %v980 = vadd.f32 %v345, %v979
        %v981 = vpop.f32.mrb[0].mxu0
        %982 = vmatprep.mubr.f32.mxu0 0.0
        %983 = vmatmul.mubr.f32.gmra.mrb[0].mxu0 %v474
        %v984 = vpop.f32.mrb[0].mxu0
        %v985 = vadd.f32 %v345, %v984
        %v986 = vpop.f32.mrb[0].mxu0
        %987 = vmatprep.mubr.f32.mxu0 0.0
        %988 = vmatmul.mubr.f32.gmra.mrb[0].mxu0 %v491
        %v989 = vpop.f32.mrb[0].mxu0
        %v990 = vadd.f32 %v345, %v989
        %v991 = vpop.f32.mrb[0].mxu0
        %992 = vmatprep.mubr.f32.mxu0 0.0
        %993 = vmatmul.mubr.f32.gmra.mrb[0].mxu0 %v492
        %v994 = vpop.f32.mrb[0].mxu0
        %v995 = vadd.f32 %v345, %v994
        %v996 = vpop.f32.mrb[0].mxu0
        %997 = vmatprep.mubr.f32.mxu0 0.0
        %998 = vmatmul.mubr.f32.gmra.mrb[0].mxu0 %v493
        %v999 = vpop.f32.mrb[0].mxu0
        %v1000 = vadd.f32 %v345, %v999
        %v1001 = vpop.f32.mrb[0].mxu0
        %1002 = vmatprep.mubr.f32.mxu0 0.0
        %1003 = vmatmul.mubr.f32.gmra.mrb[0].mxu0 %v494
        %v1004 = vpop.f32.mrb[0].mxu0
        %v1005 = vadd.f32 %v345, %v1004
        %v1006 = vpop.f32.mrb[0].mxu0
        %1007 = vmatprep.mubr.f32.mxu0 0.0
        %1008 = vmatmul.mubr.f32.gmra.mrb[0].mxu0 %v495
        %v1009 = vpop.f32.mrb[0].mxu0
        %v1010 = vadd.f32 %v345, %v1009
        %v1011 = vpop.f32.mrb[0].mxu0
        %1012 = vmatprep.mubr.f32.mxu0 0.0
        %1013 = vmatmul.mubr.f32.gmra.mrb[0].mxu0 %v496
        %v1014 = vpop.f32.mrb[0].mxu0
        %v1015 = vadd.f32 %v345, %v1014
        %v1016 = vpop.f32.mrb[0].mxu0
        %1017 = vmatprep.mubr.f32.mxu0 0.0
        %1018 = vmatmul.mubr.f32.gmra.mrb[0].mxu0 %v497
        %v1019 = vpop.f32.mrb[0].mxu0
        %v1020 = vadd.f32 %v345, %v1019
        %v1021 = vpop.f32.mrb[0].mxu0
        %1022 = vmatprep.mubr.f32.mxu0 0.0
        %1023 = vmatmul.mubr.f32.gmra.mrb[0].mxu0 %v498
        %v1024 = vpop.f32.mrb[0].mxu0
        %v1025 = vadd.f32 %v345, %v1024
        %v1026 = vpop.f32.mrb[0].mxu0
        %1027 = vmatprep.mubr.f32.mxu0 0.0
        %1028 = vmatmul.mubr.f32.gmra.mrb[0].mxu0 %v499
        %v1029 = vpop.f32.mrb[0].mxu0
        %v1030 = vadd.f32 %v345, %v1029
        %v1031 = vpop.f32.mrb[0].mxu0
        %1032 = vmatprep.mubr.f32.mxu0 0.0
        %1033 = vmatmul.mubr.f32.gmra.mrb[0].mxu0 %v500
        %v1034 = vpop.f32.mrb[0].mxu0
        %v1035 = vadd.f32 %v345, %v1034
        %v1036 = vpop.f32.mrb[0].mxu0
        %1037 = vmatprep.mubr.f32.mxu0 0.0
        %1038 = vmatmul.mubr.f32.gmra.mrb[0].mxu0 %v501
        %v1039 = vpop.f32.mrb[0].mxu0
        %v1040 = vadd.f32 %v345, %v1039
        %v1041 = vpop.f32.mrb[0].mxu0
        %1042 = vmatprep.mubr.f32.mxu0 0.0
        %1043 = vmatmul.mubr.f32.gmra.mrb[0].mxu0 %v502
        %v1044 = vpop.f32.mrb[0].mxu0
        %v1045 = vadd.f32 %v345, %v1044
        %v1046 = vpop.f32.mrb[0].mxu0
        %1047 = vmatprep.mubr.f32.mxu0 0.0
        %1048 = vmatmul.mubr.f32.gmra.mrb[0].mxu0 %v503
        %v1049 = vpop.f32.mrb[0].mxu0
        %v1050 = vadd.f32 %v345, %v1049
        %v1051 = vpop.f32.mrb[0].mxu0
        %1052 = vmatprep.mubr.f32.mxu0 0.0
        %1053 = vmatmul.mubr.f32.gmra.mrb[0].mxu0 %v504
        %v1054 = vpop.f32.mrb[0].mxu0
        %v1055 = vadd.f32 %v345, %v1054
        %v1056 = vpop.f32.mrb[0].mxu0
        %1057 = vmatprep.mubr.f32.mxu0 0.0
        %1058 = vmatmul.mubr.f32.gmra.mrb[0].mxu0 %v505
        %v1059 = vpop.f32.mrb[0].mxu0
        %v1060 = vadd.f32 %v345, %v1059
        %v1061 = vpop.f32.mrb[0].mxu0
        %1062 = vmatprep.mubr.f32.mxu0 0.0
        %1063 = vmatmul.mubr.f32.gmra.mrb[0].mxu0 %v506
        %v1064 = vpop.f32.mrb[0].mxu0
        %v1065 = vadd.f32 %v345, %v1064
        %v1066 = vpop.f32.mrb[0].mxu0
        %1067 = vmatprep.mubr.f32.mxu0 0.0
        %1068 = vmatmul.mubr.f32.gmra.mrb[0].mxu0 %v523
        %v1069 = vpop.f32.mrb[0].mxu0
        %v1070 = vadd.f32 %v345, %v1069
        %v1071 = vpop.f32.mrb[0].mxu0
        %1072 = vmatprep.mubr.f32.mxu0 0.0
        %1073 = vmatmul.mubr.f32.gmra.mrb[0].mxu0 %v524
        %v1074 = vpop.f32.mrb[0].mxu0
        %v1075 = vadd.f32 %v345, %v1074
        %v1076 = vpop.f32.mrb[0].mxu0
        %1077 = vmatprep.mubr.f32.mxu0 0.0
        %1078 = vmatmul.mubr.f32.gmra.mrb[0].mxu0 %v525
        %v1079 = vpop.f32.mrb[0].mxu0
        %v1080 = vadd.f32 %v345, %v1079
        %v1081 = vpop.f32.mrb[0].mxu0
        %1082 = vmatprep.mubr.f32.mxu0 0.0
        %1083 = vmatmul.mubr.f32.gmra.mrb[0].mxu0 %v526
        %v1084 = vpop.f32.mrb[0].mxu0
        %v1085 = vadd.f32 %v345, %v1084
        %v1086 = vpop.f32.mrb[0].mxu0
        %1087 = vmatprep.mubr.f32.mxu0 0.0
        %1088 = vmatmul.mubr.f32.gmra.mrb[0].mxu0 %v527
        %v1089 = vpop.f32.mrb[0].mxu0
        %v1090 = vadd.f32 %v345, %v1089
        %v1091 = vpop.f32.mrb[0].mxu0
        %1092 = vmatprep.mubr.f32.mxu0 0.0
        %1093 = vmatmul.mubr.f32.gmra.mrb[0].mxu0 %v528
        %v1094 = vpop.f32.mrb[0].mxu0
        %v1095 = vadd.f32 %v345, %v1094
        %v1096 = vpop.f32.mrb[0].mxu0
        %1097 = vmatprep.mubr.f32.mxu0 0.0
        %1098 = vmatmul.mubr.f32.gmra.mrb[0].mxu0 %v529
        %v1099 = vpop.f32.mrb[0].mxu0
        %v1100 = vadd.f32 %v345, %v1099
        %v1101 = vpop.f32.mrb[0].mxu0
        %1102 = vmatprep.mubr.f32.mxu0 0.0
        %1103 = vmatmul.mubr.f32.gmra.mrb[0].mxu0 %v530
        %v1104 = vpop.f32.mrb[0].mxu0
        %v1105 = vadd.f32 %v345, %v1104
        %v1106 = vpop.f32.mrb[0].mxu0
        %1107 = vmatprep.mubr.f32.mxu0 0.0
        %1108 = vmatmul.mubr.f32.gmra.mrb[0].mxu0 %v531
        %v1109 = vpop.f32.mrb[0].mxu0
        %v1110 = vadd.f32 %v345, %v1109
        %v1111 = vpop.f32.mrb[0].mxu0
        %1112 = vmatprep.mubr.f32.mxu0 0.0
        %1113 = vmatmul.mubr.f32.gmra.mrb[0].mxu0 %v532
        %v1114 = vpop.f32.mrb[0].mxu0
        %v1115 = vadd.f32 %v345, %v1114
        %v1116 = vpop.f32.mrb[0].mxu0
        %1117 = vmatprep.mubr.f32.mxu0 0.0
        %1118 = vmatmul.mubr.f32.gmra.mrb[0].mxu0 %v533
        %v1119 = vpop.f32.mrb[0].mxu0
        %v1120 = vadd.f32 %v345, %v1119
        %v1121 = vpop.f32.mrb[0].mxu0
        %1122 = vmatprep.mubr.f32.mxu0 0.0
        %1123 = vmatmul.mubr.f32.gmra.mrb[0].mxu0 %v534
        %v1124 = vpop.f32.mrb[0].mxu0
        %v1125 = vadd.f32 %v345, %v1124
        %v1126 = vpop.f32.mrb[0].mxu0
        %1127 = vmatprep.mubr.f32.mxu0 0.0
        %1128 = vmatmul.mubr.f32.gmra.mrb[0].mxu0 %v535
        %v1129 = vpop.f32.mrb[0].mxu0
        %v1130 = vadd.f32 %v345, %v1129
        %v1131 = vpop.f32.mrb[0].mxu0
        %1132 = vmatprep.mubr.f32.mxu0 0.0
        %1133 = vmatmul.mubr.f32.gmra.mrb[0].mxu0 %v536
        %v1134 = vpop.f32.mrb[0].mxu0
        %v1135 = vadd.f32 %v345, %v1134
        %v1136 = vpop.f32.mrb[0].mxu0
        %1137 = vmatprep.mubr.f32.mxu0 0.0
        %1138 = vmatmul.mubr.f32.gmra.mrb[0].mxu0 %v537
        %v1139 = vpop.f32.mrb[0].mxu0
        %v1140 = vadd.f32 %v345, %v1139
        %v1141 = vpop.f32.mrb[0].mxu0
        %1142 = vmatprep.mubr.f32.mxu0 0.0
        %1143 = vmatmul.mubr.f32.gmra.mrb[0].mxu0 %v538
        %v1144 = vpop.f32.mrb[0].mxu0
        %v1145 = vadd.f32 %v345, %v1144
        %v1146 = vpop.f32.mrb[0].mxu0
        %1147 = vmatprep.mubr.f32.mxu0 0.0
        %1148 = vmatmul.mubr.f32.gmra.mrb[0].mxu0 %v555
        %v1149 = vpop.f32.mrb[0].mxu0
        %v1150 = vadd.f32 %v345, %v1149
        %v1151 = vpop.f32.mrb[0].mxu0
        %1152 = vmatprep.mubr.f32.mxu0 0.0
        %1153 = vmatmul.mubr.f32.gmra.mrb[0].mxu0 %v556
        %v1154 = vpop.f32.mrb[0].mxu0
        %v1155 = vadd.f32 %v345, %v1154
        %v1156 = vpop.f32.mrb[0].mxu0
        %1157 = vmatprep.mubr.f32.mxu0 0.0
        %1158 = vmatmul.mubr.f32.gmra.mrb[0].mxu0 %v557
        %v1159 = vpop.f32.mrb[0].mxu0
        %v1160 = vadd.f32 %v345, %v1159
        %v1161 = vpop.f32.mrb[0].mxu0
        %1162 = vmatprep.mubr.f32.mxu0 0.0
        %1163 = vmatmul.mubr.f32.gmra.mrb[0].mxu0 %v558
        %v1164 = vpop.f32.mrb[0].mxu0
        %v1165 = vadd.f32 %v345, %v1164
        %v1166 = vpop.f32.mrb[0].mxu0
        %1167 = vmatprep.mubr.f32.mxu0 0.0
        %1168 = vmatmul.mubr.f32.gmra.mrb[0].mxu0 %v559
        %v1169 = vpop.f32.mrb[0].mxu0
        %v1170 = vadd.f32 %v345, %v1169
        %v1171 = vpop.f32.mrb[0].mxu0
        %1172 = vmatprep.mubr.f32.mxu0 0.0
        %1173 = vmatmul.mubr.f32.gmra.mrb[0].mxu0 %v560
        %v1174 = vpop.f32.mrb[0].mxu0
        %v1175 = vadd.f32 %v345, %v1174
        %v1176 = vpop.f32.mrb[0].mxu0
        %1177 = vmatprep.mubr.f32.mxu0 0.0
        %1178 = vmatmul.mubr.f32.gmra.mrb[0].mxu0 %v561
        %v1179 = vpop.f32.mrb[0].mxu0
        %v1180 = vadd.f32 %v345, %v1179
        %v1181 = vpop.f32.mrb[0].mxu0
        %1182 = vmatprep.mubr.f32.mxu0 0.0
        %1183 = vmatmul.mubr.f32.gmra.mrb[0].mxu0 %v562
        %v1184 = vpop.f32.mrb[0].mxu0
        %v1185 = vadd.f32 %v345, %v1184
        %v1186 = vpop.f32.mrb[0].mxu0
        %1187 = vmatprep.mubr.f32.mxu0 0.0
        %1188 = vmatmul.mubr.f32.gmra.mrb[0].mxu0 %v563
        %v1189 = vpop.f32.mrb[0].mxu0
        %v1190 = vadd.f32 %v345, %v1189
        %v1191 = vpop.f32.mrb[0].mxu0
        %1192 = vmatprep.mubr.f32.mxu0 0.0
        %1193 = vmatmul.mubr.f32.gmra.mrb[0].mxu0 %v564
        %v1194 = vpop.f32.mrb[0].mxu0
        %v1195 = vadd.f32 %v345, %v1194
        %v1196 = vpop.f32.mrb[0].mxu0
        %1197 = vmatprep.mubr.f32.mxu0 0.0
        %1198 = vmatmul.mubr.f32.gmra.mrb[0].mxu0 %v565
        %v1199 = vpop.f32.mrb[0].mxu0
        %v1200 = vadd.f32 %v345, %v1199
        %v1201 = vpop.f32.mrb[0].mxu0
        %1202 = vmatprep.mubr.f32.mxu0 0.0
        %1203 = vmatmul.mubr.f32.gmra.mrb[0].mxu0 %v566
        %v1204 = vpop.f32.mrb[0].mxu0
        %v1205 = vadd.f32 %v345, %v1204
        %v1206 = vpop.f32.mrb[0].mxu0
        %1207 = vmatprep.mubr.f32.mxu0 0.0
        %1208 = vmatmul.mubr.f32.gmra.mrb[0].mxu0 %v567
        %v1209 = vpop.f32.mrb[0].mxu0
        %v1210 = vadd.f32 %v345, %v1209
        %v1211 = vpop.f32.mrb[0].mxu0
        %1212 = vmatprep.mubr.f32.mxu0 0.0
        %1213 = vmatmul.mubr.f32.gmra.mrb[0].mxu0 %v568
        %v1214 = vpop.f32.mrb[0].mxu0
        %v1215 = vadd.f32 %v345, %v1214
        %v1216 = vpop.f32.mrb[0].mxu0
        %1217 = vmatprep.mubr.f32.mxu0 0.0
        %1218 = vmatmul.mubr.f32.gmra.mrb[0].mxu0 %v569
        %v1219 = vpop.f32.mrb[0].mxu0
        %v1220 = vadd.f32 %v345, %v1219
        %v1221 = vpop.f32.mrb[0].mxu0
        %1222 = vmatprep.mubr.f32.mxu0 0.0
        %1223 = vmatmul.mubr.f32.gmra.mrb[0].mxu0 %v570
        %v1224 = vpop.f32.mrb[0].mxu0
        %v1225 = vadd.f32 %v345, %v1224
        %v1226 = vpop.f32.mrb[0].mxu0
        %1227 = vmatprep.mubr.f32.mxu0 0.0
        %1228 = vmatmul.mubr.f32.gmra.mrb[0].mxu0 %v587
        %v1229 = vpop.f32.mrb[0].mxu0
        %v1230 = vadd.f32 %v345, %v1229
        %v1231 = vpop.f32.mrb[0].mxu0
        %1232 = vmatprep.mubr.f32.mxu0 0.0
        %1233 = vmatmul.mubr.f32.gmra.mrb[0].mxu0 %v588
        %v1234 = vpop.f32.mrb[0].mxu0
        %v1235 = vadd.f32 %v345, %v1234
        %v1236 = vpop.f32.mrb[0].mxu0
        %1237 = vmatprep.mubr.f32.mxu0 0.0
        %1238 = vmatmul.mubr.f32.gmra.mrb[0].mxu0 %v589
        %v1239 = vpop.f32.mrb[0].mxu0
        %v1240 = vadd.f32 %v345, %v1239
        %v1241 = vpop.f32.mrb[0].mxu0
        %1242 = vmatprep.mubr.f32.mxu0 0.0
        %1243 = vmatmul.mubr.f32.gmra.mrb[0].mxu0 %v590
        %v1244 = vpop.f32.mrb[0].mxu0
        %v1245 = vadd.f32 %v345, %v1244
        %v1246 = vpop.f32.mrb[0].mxu0
        %1247 = vmatprep.mubr.f32.mxu0 0.0
        %1248 = vmatmul.mubr.f32.gmra.mrb[0].mxu0 %v591
        %v1249 = vpop.f32.mrb[0].mxu0
        %v1250 = vadd.f32 %v345, %v1249
        %v1251 = vpop.f32.mrb[0].mxu0
        %1252 = vmatprep.mubr.f32.mxu0 0.0
        %1253 = vmatmul.mubr.f32.gmra.mrb[0].mxu0 %v592
        %v1254 = vpop.f32.mrb[0].mxu0
        %v1255 = vadd.f32 %v345, %v1254
        %v1256 = vpop.f32.mrb[0].mxu0
        %1257 = vmatprep.mubr.f32.mxu0 0.0
        %1258 = vmatmul.mubr.f32.gmra.mrb[0].mxu0 %v593
        %v1259 = vpop.f32.mrb[0].mxu0
        %v1260 = vadd.f32 %v345, %v1259
        %v1261 = vpop.f32.mrb[0].mxu0
        %1262 = vmatprep.mubr.f32.mxu0 0.0
        %1263 = vmatmul.mubr.f32.gmra.mrb[0].mxu0 %v594
        %v1264 = vpop.f32.mrb[0].mxu0
        %v1265 = vadd.f32 %v345, %v1264
        %v1266 = vpop.f32.mrb[0].mxu0
        %1267 = vmatprep.mubr.f32.mxu0 0.0
        %1268 = vmatmul.mubr.f32.gmra.mrb[0].mxu0 %v595
        %v1269 = vpop.f32.mrb[0].mxu0
        %v1270 = vadd.f32 %v345, %v1269
        %v1271 = vpop.f32.mrb[0].mxu0
        %1272 = vmatprep.mubr.f32.mxu0 0.0
        %1273 = vmatmul.mubr.f32.gmra.mrb[0].mxu0 %v596
        %v1274 = vpop.f32.mrb[0].mxu0
        %v1275 = vadd.f32 %v345, %v1274
        %v1276 = vpop.f32.mrb[0].mxu0
        %1277 = vmatprep.mubr.f32.mxu0 0.0
        %1278 = vmatmul.mubr.f32.gmra.mrb[0].mxu0 %v597
        %v1279 = vpop.f32.mrb[0].mxu0
        %v1280 = vadd.f32 %v345, %v1279
        %v1281 = vpop.f32.mrb[0].mxu0
        %1282 = vmatprep.mubr.f32.mxu0 0.0
        %1283 = vmatmul.mubr.f32.gmra.mrb[0].mxu0 %v598
        %v1284 = vpop.f32.mrb[0].mxu0
        %v1285 = vadd.f32 %v345, %v1284
        %v1286 = vpop.f32.mrb[0].mxu0
        %1287 = vmatprep.mubr.f32.mxu0 0.0
        %1288 = vmatmul.mubr.f32.gmra.mrb[0].mxu0 %v599
        %v1289 = vpop.f32.mrb[0].mxu0
        %v1290 = vadd.f32 %v345, %v1289
        %v1291 = vpop.f32.mrb[0].mxu0
        %1292 = vmatprep.mubr.f32.mxu0 0.0
        %1293 = vmatmul.mubr.f32.gmra.mrb[0].mxu0 %v600
        %v1294 = vpop.f32.mrb[0].mxu0
        %v1295 = vadd.f32 %v345, %v1294
        %v1296 = vpop.f32.mrb[0].mxu0
        %1297 = vmatprep.mubr.f32.mxu0 0.0
        %1298 = vmatmul.mubr.f32.gmra.mrb[0].mxu0 %v601
        %v1299 = vpop.f32.mrb[0].mxu0
        %v1300 = vadd.f32 %v345, %v1299
        %v1301 = vpop.f32.mrb[0].mxu0
        %1302 = vmatprep.mubr.f32.mxu0 0.0
        %1303 = vmatmul.mubr.f32.gmra.mrb[0].mxu0 %v602
        %v1304 = vpop.f32.mrb[0].mxu0
        %v1305 = vadd.f32 %v345, %v1304
        %v1306 = vpop.f32.mrb[0].mxu0
        %1307 = vdwg.mxu0
        %1308 = vst [vmem:[%s184] sm:$0xff] %v670
        %1309 = vst [vmem:[%s184 + $0x8] sm:$0xff] %v675
        %1310 = vst [vmem:[%s184 + $0x10] sm:$0xff] %v680
        %1311 = vst [vmem:[%s184 + $0x18] sm:$0xff] %v685
        %1312 = vst [vmem:[%s184 + $0x20] sm:$0xff] %v690
        %1313 = vst [vmem:[%s184 + $0x28] sm:$0xff] %v695
        %1314 = vst [vmem:[%s184 + $0x30] sm:$0xff] %v700
        %1315 = vst [vmem:[%s184 + $0x38] sm:$0xff] %v705
        %1316 = vst [vmem:[%s184 + $0x40] sm:$0xff] %v710
        %1317 = vst [vmem:[%s184 + $0x48] sm:$0xff] %v715
        %1318 = vst [vmem:[%s184 + $0x50] sm:$0xff] %v720
        %1319 = vst [vmem:[%s184 + $0x58] sm:$0xff] %v725
        %1320 = vst [vmem:[%s184 + $0x60] sm:$0xff] %v730
        %1321 = vst [vmem:[%s184 + $0x68] sm:$0xff] %v735
        %1322 = vst [vmem:[%s184 + $0x70] sm:$0xff] %v740
        %1323 = vst [vmem:[%s184 + $0x78] sm:$0xff] %v745
        %1324 = vst [vmem:[%s184 + $0x80] sm:$0xff] %v750
        %1325 = vst [vmem:[%s184 + $0x88] sm:$0xff] %v755
        %1326 = vst [vmem:[%s184 + $0x90] sm:$0xff] %v760
        %1327 = vst [vmem:[%s184 + $0x98] sm:$0xff] %v765
        %1328 = vst [vmem:[%s184 + $0xa0] sm:$0xff] %v770
        %1329 = vst [vmem:[%s184 + $0xa8] sm:$0xff] %v775
        %1330 = vst [vmem:[%s184 + $0xb0] sm:$0xff] %v780
        %1331 = vst [vmem:[%s184 + $0xb8] sm:$0xff] %v785
        %1332 = vst [vmem:[%s184 + $0xc0] sm:$0xff] %v790
        %1333 = vst [vmem:[%s184 + $0xc8] sm:$0xff] %v795
        %1334 = vst [vmem:[%s184 + $0xd0] sm:$0xff] %v800
        %1335 = vst [vmem:[%s184 + $0xd8] sm:$0xff] %v805
        %1336 = vst [vmem:[%s184 + $0xe0] sm:$0xff] %v810
        %1337 = vst [vmem:[%s184 + $0xe8] sm:$0xff] %v815
        %1338 = vst [vmem:[%s184 + $0xf0] sm:$0xff] %v820
        %1339 = vst [vmem:[%s184 + $0xf8] sm:$0xff] %v825
        %1340 = vst [vmem:[%s184 + $0x100] sm:$0xff] %v830
        %1341 = vst [vmem:[%s184 + $0x108] sm:$0xff] %v835
        %1342 = vst [vmem:[%s184 + $0x110] sm:$0xff] %v840
        %1343 = vst [vmem:[%s184 + $0x118] sm:$0xff] %v845
        %1344 = vst [vmem:[%s184 + $0x120] sm:$0xff] %v850
        %1345 = vst [vmem:[%s184 + $0x128] sm:$0xff] %v855
        %1346 = vst [vmem:[%s184 + $0x130] sm:$0xff] %v860
        %1347 = vst [vmem:[%s184 + $0x138] sm:$0xff] %v865
        %1348 = vst [vmem:[%s184 + $0x140] sm:$0xff] %v870
        %1349 = vst [vmem:[%s184 + $0x148] sm:$0xff] %v875
        %1350 = vst [vmem:[%s184 + $0x150] sm:$0xff] %v880
        %1351 = vst [vmem:[%s184 + $0x158] sm:$0xff] %v885
        %1352 = vst [vmem:[%s184 + $0x160] sm:$0xff] %v890
        %1353 = vst [vmem:[%s184 + $0x168] sm:$0xff] %v895
        %1354 = vst [vmem:[%s184 + $0x170] sm:$0xff] %v900
        %1355 = vst [vmem:[%s184 + $0x178] sm:$0xff] %v905
        %1356 = vst [vmem:[%s184 + $0x180] sm:$0xff] %v910
        %1357 = vst [vmem:[%s184 + $0x188] sm:$0xff] %v915
        %1358 = vst [vmem:[%s184 + $0x190] sm:$0xff] %v920
        %1359 = vst [vmem:[%s184 + $0x198] sm:$0xff] %v925
        %1360 = vst [vmem:[%s184 + $0x1a0] sm:$0xff] %v930
        %1361 = vst [vmem:[%s184 + $0x1a8] sm:$0xff] %v935
        %1362 = vst [vmem:[%s184 + $0x1b0] sm:$0xff] %v940
        %1363 = vst [vmem:[%s184 + $0x1b8] sm:$0xff] %v945
        %1364 = vst [vmem:[%s184 + $0x1c0] sm:$0xff] %v950
        %1365 = vst [vmem:[%s184 + $0x1c8] sm:$0xff] %v955
        %1366 = vst [vmem:[%s184 + $0x1d0] sm:$0xff] %v960
        %1367 = vst [vmem:[%s184 + $0x1d8] sm:$0xff] %v965
        %1368 = vst [vmem:[%s184 + $0x1e0] sm:$0xff] %v970
        %1369 = vst [vmem:[%s184 + $0x1e8] sm:$0xff] %v975
        %1370 = vst [vmem:[%s184 + $0x1f0] sm:$0xff] %v980
        %1371 = vst [vmem:[%s184 + $0x1f8] sm:$0xff] %v985
        %1372 = vst [vmem:[%s184 + $0x200] sm:$0xff] %v990
        %1373 = vst [vmem:[%s184 + $0x208] sm:$0xff] %v995
        %1374 = vst [vmem:[%s184 + $0x210] sm:$0xff] %v1000
        %1375 = vst [vmem:[%s184 + $0x218] sm:$0xff] %v1005
        %1376 = vst [vmem:[%s184 + $0x220] sm:$0xff] %v1010
        %1377 = vst [vmem:[%s184 + $0x228] sm:$0xff] %v1015
        %1378 = vst [vmem:[%s184 + $0x230] sm:$0xff] %v1020
        %1379 = vst [vmem:[%s184 + $0x238] sm:$0xff] %v1025
        %1380 = vst [vmem:[%s184 + $0x240] sm:$0xff] %v1030
        %1381 = vst [vmem:[%s184 + $0x248] sm:$0xff] %v1035
        %1382 = vst [vmem:[%s184 + $0x250] sm:$0xff] %v1040
        %1383 = vst [vmem:[%s184 + $0x258] sm:$0xff] %v1045
        %1384 = vst [vmem:[%s184 + $0x260] sm:$0xff] %v1050
        %1385 = vst [vmem:[%s184 + $0x268] sm:$0xff] %v1055
        %1386 = vst [vmem:[%s184 + $0x270] sm:$0xff] %v1060
        %1387 = vst [vmem:[%s184 + $0x278] sm:$0xff] %v1065
        %1388 = vst [vmem:[%s184 + $0x280] sm:$0xff] %v1070
        %1389 = vst [vmem:[%s184 + $0x288] sm:$0xff] %v1075
        %1390 = vst [vmem:[%s184 + $0x290] sm:$0xff] %v1080
        %1391 = vst [vmem:[%s184 + $0x298] sm:$0xff] %v1085
        %1392 = vst [vmem:[%s184 + $0x2a0] sm:$0xff] %v1090
        %1393 = vst [vmem:[%s184 + $0x2a8] sm:$0xff] %v1095
        %1394 = vst [vmem:[%s184 + $0x2b0] sm:$0xff] %v1100
        %1395 = vst [vmem:[%s184 + $0x2b8] sm:$0xff] %v1105
        %1396 = vst [vmem:[%s184 + $0x2c0] sm:$0xff] %v1110
        %1397 = vst [vmem:[%s184 + $0x2c8] sm:$0xff] %v1115
        %1398 = vst [vmem:[%s184 + $0x2d0] sm:$0xff] %v1120
        %1399 = vst [vmem:[%s184 + $0x2d8] sm:$0xff] %v1125
        %1400 = vst [vmem:[%s184 + $0x2e0] sm:$0xff] %v1130
        %1401 = vst [vmem:[%s184 + $0x2e8] sm:$0xff] %v1135
        %1402 = vst [vmem:[%s184 + $0x2f0] sm:$0xff] %v1140
        %1403 = vst [vmem:[%s184 + $0x2f8] sm:$0xff] %v1145
        %1404 = vst [vmem:[%s184 + $0x300] sm:$0xff] %v1150
        %1405 = vst [vmem:[%s184 + $0x308] sm:$0xff] %v1155
        %1406 = vst [vmem:[%s184 + $0x310] sm:$0xff] %v1160
        %1407 = vst [vmem:[%s184 + $0x318] sm:$0xff] %v1165
        %1408 = vst [vmem:[%s184 + $0x320] sm:$0xff] %v1170
        %1409 = vst [vmem:[%s184 + $0x328] sm:$0xff] %v1175
        %1410 = vst [vmem:[%s184 + $0x330] sm:$0xff] %v1180
        %1411 = vst [vmem:[%s184 + $0x338] sm:$0xff] %v1185
        %1412 = vst [vmem:[%s184 + $0x340] sm:$0xff] %v1190
        %1413 = vst [vmem:[%s184 + $0x348] sm:$0xff] %v1195
        %1414 = vst [vmem:[%s184 + $0x350] sm:$0xff] %v1200
        %1415 = vst [vmem:[%s184 + $0x358] sm:$0xff] %v1205
        %1416 = vst [vmem:[%s184 + $0x360] sm:$0xff] %v1210
        %1417 = vst [vmem:[%s184 + $0x368] sm:$0xff] %v1215
        %1418 = vst [vmem:[%s184 + $0x370] sm:$0xff] %v1220
        %1419 = vst [vmem:[%s184 + $0x378] sm:$0xff] %v1225
        %1420 = vst [vmem:[%s184 + $0x380] sm:$0xff] %v1230
        %1421 = vst [vmem:[%s184 + $0x388] sm:$0xff] %v1235
        %1422 = vst [vmem:[%s184 + $0x390] sm:$0xff] %v1240
        %1423 = vst [vmem:[%s184 + $0x398] sm:$0xff] %v1245
        %1424 = vst [vmem:[%s184 + $0x3a0] sm:$0xff] %v1250
        %1425 = vst [vmem:[%s184 + $0x3a8] sm:$0xff] %v1255
        %1426 = vst [vmem:[%s184 + $0x3b0] sm:$0xff] %v1260
        %1427 = vst [vmem:[%s184 + $0x3b8] sm:$0xff] %v1265
        %1428 = vst [vmem:[%s184 + $0x3c0] sm:$0xff] %v1270
        %1429 = vst [vmem:[%s184 + $0x3c8] sm:$0xff] %v1275
        %1430 = vst [vmem:[%s184 + $0x3d0] sm:$0xff] %v1280
        %1431 = vst [vmem:[%s184 + $0x3d8] sm:$0xff] %v1285
        %1432 = vst [vmem:[%s184 + $0x3e0] sm:$0xff] %v1290
        %1433 = vst [vmem:[%s184 + $0x3e8] sm:$0xff] %v1295
        %1434 = vst [vmem:[%s184 + $0x3f0] sm:$0xff] %v1300
        %1435 = vst [vmem:[%s184 + $0x3f8] sm:$0xff] %v1305
        %s1436 = sand.u32 %s106, 1
        %s1437 = sand.u32 %s106, 1
        %s1438 = smul.addr %s1437, 1024
        %s1439 = scalar_lea.vmem [#allocation2], %s1438
        // Predicated region
        $region33: #{recognition_head_pallas.1} parent=31 // pred_check
          %p1440 = pneg %p116
        $region34: #{recognition_head_pallas.1} parent=31 // pred_check_branch
          %1442 = sbr.rel (%p1440) target = $region36
        $region35: #{recognition_head_pallas.1} parent=31 // pred_region
          %s1443 = smul.u32 128, %s19
          %s1444 = smul.addr %s1443, 2
          %s1445 = sadd.s32 %s18, %s1444
          %s1446 = smul.addr %s1445, 8
          %s1447 = scalar_lea.vmem %s3, %s1446
          // Predicated region
          $region37: #{recognition_head_pallas.1} parent=35 // pred_check
            _
          $region38: #{recognition_head_pallas.1} parent=35 // pred_check_branch
            %1449 = sbr.rel (0) target = $region40
          $region39: #{recognition_head_pallas.1} parent=35 // pred_region
            // Predicated region
            $region41: #{recognition_head_pallas.1} parent=39 // pred_check
              _
            $region42: #{recognition_head_pallas.1} parent=39 // pred_check_branch
              %1451 = sbr.rel (0) target = $region44
            $region43: #{recognition_head_pallas.1} parent=39 // pred_region
              // Predicated region
              $region56: #{recognition_head_pallas.1} parent=43 // pred_check
                _
              $region57: #{recognition_head_pallas.1} parent=43 // pred_check_branch
                %1720 = sbr.rel (0) target = $region59
              $region58: #{recognition_head_pallas.1} parent=43 // pred_region
                loop: start=0, step=1, limit=1
                $region60: #{recognition_head_pallas.1} parent=58 // loop_pre_header
                  _
                $region61: #{recognition_head_pallas.1} parent=58 // loop_header
                  %s1722 = sphi 0, %s1726
                  %p1723 = scmp.ge.s32.totalorder %s1722, 1
                  %s1727 = sphi %s1439, %s1439
                  %s1728 = sphi %s1447, %s1447
                $region62: #{recognition_head_pallas.1} parent=58 // loop_header_branch
                  %1725 = sbr.rel (%p1723) target = $region66
                $region63: #{recognition_head_pallas.1} parent=58 // loop_body
                  %v1729 = vld [vmem:[%s1727] sm:$0xff]
                  %1730 = vst [vmem:[%s1728] sm:$0xff] %v1729
                  %v1731 = vld [vmem:[%s1727 + $0x8] sm:$0xff]
                  %1732 = vst [vmem:[%s1728 + $0x10] sm:$0xff] %v1731
                  %v1733 = vld [vmem:[%s1727 + $0x10] sm:$0xff]
                  %1734 = vst [vmem:[%s1728 + $0x20] sm:$0xff] %v1733
                  %v1735 = vld [vmem:[%s1727 + $0x18] sm:$0xff]
                  %1736 = vst [vmem:[%s1728 + $0x30] sm:$0xff] %v1735
                  %v1737 = vld [vmem:[%s1727 + $0x20] sm:$0xff]
                  %1738 = vst [vmem:[%s1728 + $0x40] sm:$0xff] %v1737
                  %v1739 = vld [vmem:[%s1727 + $0x28] sm:$0xff]
                  %1740 = vst [vmem:[%s1728 + $0x50] sm:$0xff] %v1739
                  %v1741 = vld [vmem:[%s1727 + $0x30] sm:$0xff]
                  %1742 = vst [vmem:[%s1728 + $0x60] sm:$0xff] %v1741
                  %v1743 = vld [vmem:[%s1727 + $0x38] sm:$0xff]
                  %1744 = vst [vmem:[%s1728 + $0x70] sm:$0xff] %v1743
                  %v1745 = vld [vmem:[%s1727 + $0x40] sm:$0xff]
                  %1746 = vst [vmem:[%s1728 + $0x80] sm:$0xff] %v1745
                  %v1747 = vld [vmem:[%s1727 + $0x48] sm:$0xff]
                  %1748 = vst [vmem:[%s1728 + $0x90] sm:$0xff] %v1747
                  %v1749 = vld [vmem:[%s1727 + $0x50] sm:$0xff]
                  %1750 = vst [vmem:[%s1728 + $0xa0] sm:$0xff] %v1749
                  %v1751 = vld [vmem:[%s1727 + $0x58] sm:$0xff]
                  %1752 = vst [vmem:[%s1728 + $0xb0] sm:$0xff] %v1751
                  %v1753 = vld [vmem:[%s1727 + $0x60] sm:$0xff]
                  %1754 = vst [vmem:[%s1728 + $0xc0] sm:$0xff] %v1753
                  %v1755 = vld [vmem:[%s1727 + $0x68] sm:$0xff]
                  %1756 = vst [vmem:[%s1728 + $0xd0] sm:$0xff] %v1755
                  %v1757 = vld [vmem:[%s1727 + $0x70] sm:$0xff]
                  %1758 = vst [vmem:[%s1728 + $0xe0] sm:$0xff] %v1757
                  %v1759 = vld [vmem:[%s1727 + $0x78] sm:$0xff]
                  %1760 = vst [vmem:[%s1728 + $0xf0] sm:$0xff] %v1759
                  %v1761 = vld [vmem:[%s1727 + $0x80] sm:$0xff]
                  %1762 = vst [vmem:[%s1728 + $0x100] sm:$0xff] %v1761
                  %v1763 = vld [vmem:[%s1727 + $0x88] sm:$0xff]
                  %1764 = vst [vmem:[%s1728 + $0x110] sm:$0xff] %v1763
                  %v1765 = vld [vmem:[%s1727 + $0x90] sm:$0xff]
                  %1766 = vst [vmem:[%s1728 + $0x120] sm:$0xff] %v1765
                  %v1767 = vld [vmem:[%s1727 + $0x98] sm:$0xff]
                  %1768 = vst [vmem:[%s1728 + $0x130] sm:$0xff] %v1767
                  %v1769 = vld [vmem:[%s1727 + $0xa0] sm:$0xff]
                  %1770 = vst [vmem:[%s1728 + $0x140] sm:$0xff] %v1769
                  %v1771 = vld [vmem:[%s1727 + $0xa8] sm:$0xff]
                  %1772 = vst [vmem:[%s1728 + $0x150] sm:$0xff] %v1771
                  %v1773 = vld [vmem:[%s1727 + $0xb0] sm:$0xff]
                  %1774 = vst [vmem:[%s1728 + $0x160] sm:$0xff] %v1773
                  %v1775 = vld [vmem:[%s1727 + $0xb8] sm:$0xff]
                  %1776 = vst [vmem:[%s1728 + $0x170] sm:$0xff] %v1775
                  %v1777 = vld [vmem:[%s1727 + $0xc0] sm:$0xff]
                  %1778 = vst [vmem:[%s1728 + $0x180] sm:$0xff] %v1777
                  %v1779 = vld [vmem:[%s1727 + $0xc8] sm:$0xff]
                  %1780 = vst [vmem:[%s1728 + $0x190] sm:$0xff] %v1779
                  %v1781 = vld [vmem:[%s1727 + $0xd0] sm:$0xff]
                  %1782 = vst [vmem:[%s1728 + $0x1a0] sm:$0xff] %v1781
                  %v1783 = vld [vmem:[%s1727 + $0xd8] sm:$0xff]
                  %1784 = vst [vmem:[%s1728 + $0x1b0] sm:$0xff] %v1783
                  %v1785 = vld [vmem:[%s1727 + $0xe0] sm:$0xff]
                  %1786 = vst [vmem:[%s1728 + $0x1c0] sm:$0xff] %v1785
                  %v1787 = vld [vmem:[%s1727 + $0xe8] sm:$0xff]
                  %1788 = vst [vmem:[%s1728 + $0x1d0] sm:$0xff] %v1787
                  %v1789 = vld [vmem:[%s1727 + $0xf0] sm:$0xff]
                  %1790 = vst [vmem:[%s1728 + $0x1e0] sm:$0xff] %v1789
                  %v1791 = vld [vmem:[%s1727 + $0xf8] sm:$0xff]
                  %1792 = vst [vmem:[%s1728 + $0x1f0] sm:$0xff] %v1791
                  %v1793 = vld [vmem:[%s1727 + $0x100] sm:$0xff]
                  %1794 = vst [vmem:[%s1728 + $0x200] sm:$0xff] %v1793
                  %v1795 = vld [vmem:[%s1727 + $0x108] sm:$0xff]
                  %1796 = vst [vmem:[%s1728 + $0x210] sm:$0xff] %v1795
                  %v1797 = vld [vmem:[%s1727 + $0x110] sm:$0xff]
                  %1798 = vst [vmem:[%s1728 + $0x220] sm:$0xff] %v1797
                  %v1799 = vld [vmem:[%s1727 + $0x118] sm:$0xff]
                  %1800 = vst [vmem:[%s1728 + $0x230] sm:$0xff] %v1799
                  %v1801 = vld [vmem:[%s1727 + $0x120] sm:$0xff]
                  %1802 = vst [vmem:[%s1728 + $0x240] sm:$0xff] %v1801
                  %v1803 = vld [vmem:[%s1727 + $0x128] sm:$0xff]
                  %1804 = vst [vmem:[%s1728 + $0x250] sm:$0xff] %v1803
                  %v1805 = vld [vmem:[%s1727 + $0x130] sm:$0xff]
                  %1806 = vst [vmem:[%s1728 + $0x260] sm:$0xff] %v1805
                  %v1807 = vld [vmem:[%s1727 + $0x138] sm:$0xff]
                  %1808 = vst [vmem:[%s1728 + $0x270] sm:$0xff] %v1807
                  %v1809 = vld [vmem:[%s1727 + $0x140] sm:$0xff]
                  %1810 = vst [vmem:[%s1728 + $0x280] sm:$0xff] %v1809
                  %v1811 = vld [vmem:[%s1727 + $0x148] sm:$0xff]
                  %1812 = vst [vmem:[%s1728 + $0x290] sm:$0xff] %v1811
                  %v1813 = vld [vmem:[%s1727 + $0x150] sm:$0xff]
                  %1814 = vst [vmem:[%s1728 + $0x2a0] sm:$0xff] %v1813
                  %v1815 = vld [vmem:[%s1727 + $0x158] sm:$0xff]
                  %1816 = vst [vmem:[%s1728 + $0x2b0] sm:$0xff] %v1815
                  %v1817 = vld [vmem:[%s1727 + $0x160] sm:$0xff]
                  %1818 = vst [vmem:[%s1728 + $0x2c0] sm:$0xff] %v1817
                  %v1819 = vld [vmem:[%s1727 + $0x168] sm:$0xff]
                  %1820 = vst [vmem:[%s1728 + $0x2d0] sm:$0xff] %v1819
                  %v1821 = vld [vmem:[%s1727 + $0x170] sm:$0xff]
                  %1822 = vst [vmem:[%s1728 + $0x2e0] sm:$0xff] %v1821
                  %v1823 = vld [vmem:[%s1727 + $0x178] sm:$0xff]
                  %1824 = vst [vmem:[%s1728 + $0x2f0] sm:$0xff] %v1823
                  %v1825 = vld [vmem:[%s1727 + $0x180] sm:$0xff]
                  %1826 = vst [vmem:[%s1728 + $0x300] sm:$0xff] %v1825
                  %v1827 = vld [vmem:[%s1727 + $0x188] sm:$0xff]
                  %1828 = vst [vmem:[%s1728 + $0x310] sm:$0xff] %v1827
                  %v1829 = vld [vmem:[%s1727 + $0x190] sm:$0xff]
                  %1830 = vst [vmem:[%s1728 + $0x320] sm:$0xff] %v1829
                  %v1831 = vld [vmem:[%s1727 + $0x198] sm:$0xff]
                  %1832 = vst [vmem:[%s1728 + $0x330] sm:$0xff] %v1831
                  %v1833 = vld [vmem:[%s1727 + $0x1a0] sm:$0xff]
                  %1834 = vst [vmem:[%s1728 + $0x340] sm:$0xff] %v1833
                  %v1835 = vld [vmem:[%s1727 + $0x1a8] sm:$0xff]
                  %1836 = vst [vmem:[%s1728 + $0x350] sm:$0xff] %v1835
                  %v1837 = vld [vmem:[%s1727 + $0x1b0] sm:$0xff]
                  %1838 = vst [vmem:[%s1728 + $0x360] sm:$0xff] %v1837
                  %v1839 = vld [vmem:[%s1727 + $0x1b8] sm:$0xff]
                  %1840 = vst [vmem:[%s1728 + $0x370] sm:$0xff] %v1839
                  %v1841 = vld [vmem:[%s1727 + $0x1c0] sm:$0xff]
                  %1842 = vst [vmem:[%s1728 + $0x380] sm:$0xff] %v1841
                  %v1843 = vld [vmem:[%s1727 + $0x1c8] sm:$0xff]
                  %1844 = vst [vmem:[%s1728 + $0x390] sm:$0xff] %v1843
                  %v1845 = vld [vmem:[%s1727 + $0x1d0] sm:$0xff]
                  %1846 = vst [vmem:[%s1728 + $0x3a0] sm:$0xff] %v1845
                  %v1847 = vld [vmem:[%s1727 + $0x1d8] sm:$0xff]
                  %1848 = vst [vmem:[%s1728 + $0x3b0] sm:$0xff] %v1847
                  %v1849 = vld [vmem:[%s1727 + $0x1e0] sm:$0xff]
                  %1850 = vst [vmem:[%s1728 + $0x3c0] sm:$0xff] %v1849
                  %v1851 = vld [vmem:[%s1727 + $0x1e8] sm:$0xff]
                  %1852 = vst [vmem:[%s1728 + $0x3d0] sm:$0xff] %v1851
                  %v1853 = vld [vmem:[%s1727 + $0x1f0] sm:$0xff]
                  %1854 = vst [vmem:[%s1728 + $0x3e0] sm:$0xff] %v1853
                  %v1855 = vld [vmem:[%s1727 + $0x1f8] sm:$0xff]
                  %1856 = vst [vmem:[%s1728 + $0x3f0] sm:$0xff] %v1855
                  %v1857 = vld [vmem:[%s1727 + $0x200] sm:$0xff]
                  %1858 = vst [vmem:[%s1728 + $0x400] sm:$0xff] %v1857
                  %v1859 = vld [vmem:[%s1727 + $0x208] sm:$0xff]
                  %1860 = vst [vmem:[%s1728 + $0x410] sm:$0xff] %v1859
                  %v1861 = vld [vmem:[%s1727 + $0x210] sm:$0xff]
                  %1862 = vst [vmem:[%s1728 + $0x420] sm:$0xff] %v1861
                  %v1863 = vld [vmem:[%s1727 + $0x218] sm:$0xff]
                  %1864 = vst [vmem:[%s1728 + $0x430] sm:$0xff] %v1863
                  %v1865 = vld [vmem:[%s1727 + $0x220] sm:$0xff]
                  %1866 = vst [vmem:[%s1728 + $0x440] sm:$0xff] %v1865
                  %v1867 = vld [vmem:[%s1727 + $0x228] sm:$0xff]
                  %1868 = vst [vmem:[%s1728 + $0x450] sm:$0xff] %v1867
                  %v1869 = vld [vmem:[%s1727 + $0x230] sm:$0xff]
                  %1870 = vst [vmem:[%s1728 + $0x460] sm:$0xff] %v1869
                  %v1871 = vld [vmem:[%s1727 + $0x238] sm:$0xff]
                  %1872 = vst [vmem:[%s1728 + $0x470] sm:$0xff] %v1871
                  %v1873 = vld [vmem:[%s1727 + $0x240] sm:$0xff]
                  %1874 = vst [vmem:[%s1728 + $0x480] sm:$0xff] %v1873
                  %v1875 = vld [vmem:[%s1727 + $0x248] sm:$0xff]
                  %1876 = vst [vmem:[%s1728 + $0x490] sm:$0xff] %v1875
                  %v1877 = vld [vmem:[%s1727 + $0x250] sm:$0xff]
                  %1878 = vst [vmem:[%s1728 + $0x4a0] sm:$0xff] %v1877
                  %v1879 = vld [vmem:[%s1727 + $0x258] sm:$0xff]
                  %1880 = vst [vmem:[%s1728 + $0x4b0] sm:$0xff] %v1879
                  %v1881 = vld [vmem:[%s1727 + $0x260] sm:$0xff]
                  %1882 = vst [vmem:[%s1728 + $0x4c0] sm:$0xff] %v1881
                  %v1883 = vld [vmem:[%s1727 + $0x268] sm:$0xff]
                  %1884 = vst [vmem:[%s1728 + $0x4d0] sm:$0xff] %v1883
                  %v1885 = vld [vmem:[%s1727 + $0x270] sm:$0xff]
                  %1886 = vst [vmem:[%s1728 + $0x4e0] sm:$0xff] %v1885
                  %v1887 = vld [vmem:[%s1727 + $0x278] sm:$0xff]
                  %1888 = vst [vmem:[%s1728 + $0x4f0] sm:$0xff] %v1887
                  %v1889 = vld [vmem:[%s1727 + $0x280] sm:$0xff]
                  %1890 = vst [vmem:[%s1728 + $0x500] sm:$0xff] %v1889
                  %v1891 = vld [vmem:[%s1727 + $0x288] sm:$0xff]
                  %1892 = vst [vmem:[%s1728 + $0x510] sm:$0xff] %v1891
                  %v1893 = vld [vmem:[%s1727 + $0x290] sm:$0xff]
                  %1894 = vst [vmem:[%s1728 + $0x520] sm:$0xff] %v1893
                  %v1895 = vld [vmem:[%s1727 + $0x298] sm:$0xff]
                  %1896 = vst [vmem:[%s1728 + $0x530] sm:$0xff] %v1895
                  %v1897 = vld [vmem:[%s1727 + $0x2a0] sm:$0xff]
                  %1898 = vst [vmem:[%s1728 + $0x540] sm:$0xff] %v1897
                  %v1899 = vld [vmem:[%s1727 + $0x2a8] sm:$0xff]
                  %1900 = vst [vmem:[%s1728 + $0x550] sm:$0xff] %v1899
                  %v1901 = vld [vmem:[%s1727 + $0x2b0] sm:$0xff]
                  %1902 = vst [vmem:[%s1728 + $0x560] sm:$0xff] %v1901
                  %v1903 = vld [vmem:[%s1727 + $0x2b8] sm:$0xff]
                  %1904 = vst [vmem:[%s1728 + $0x570] sm:$0xff] %v1903
                  %v1905 = vld [vmem:[%s1727 + $0x2c0] sm:$0xff]
                  %1906 = vst [vmem:[%s1728 + $0x580] sm:$0xff] %v1905
                  %v1907 = vld [vmem:[%s1727 + $0x2c8] sm:$0xff]
                  %1908 = vst [vmem:[%s1728 + $0x590] sm:$0xff] %v1907
                  %v1909 = vld [vmem:[%s1727 + $0x2d0] sm:$0xff]
                  %1910 = vst [vmem:[%s1728 + $0x5a0] sm:$0xff] %v1909
                  %v1911 = vld [vmem:[%s1727 + $0x2d8] sm:$0xff]
                  %1912 = vst [vmem:[%s1728 + $0x5b0] sm:$0xff] %v1911
                  %v1913 = vld [vmem:[%s1727 + $0x2e0] sm:$0xff]
                  %1914 = vst [vmem:[%s1728 + $0x5c0] sm:$0xff] %v1913
                  %v1915 = vld [vmem:[%s1727 + $0x2e8] sm:$0xff]
                  %1916 = vst [vmem:[%s1728 + $0x5d0] sm:$0xff] %v1915
                  %v1917 = vld [vmem:[%s1727 + $0x2f0] sm:$0xff]
                  %1918 = vst [vmem:[%s1728 + $0x5e0] sm:$0xff] %v1917
                  %v1919 = vld [vmem:[%s1727 + $0x2f8] sm:$0xff]
                  %1920 = vst [vmem:[%s1728 + $0x5f0] sm:$0xff] %v1919
                  %v1921 = vld [vmem:[%s1727 + $0x300] sm:$0xff]
                  %1922 = vst [vmem:[%s1728 + $0x600] sm:$0xff] %v1921
                  %v1923 = vld [vmem:[%s1727 + $0x308] sm:$0xff]
                  %1924 = vst [vmem:[%s1728 + $0x610] sm:$0xff] %v1923
                  %v1925 = vld [vmem:[%s1727 + $0x310] sm:$0xff]
                  %1926 = vst [vmem:[%s1728 + $0x620] sm:$0xff] %v1925
                  %v1927 = vld [vmem:[%s1727 + $0x318] sm:$0xff]
                  %1928 = vst [vmem:[%s1728 + $0x630] sm:$0xff] %v1927
                  %v1929 = vld [vmem:[%s1727 + $0x320] sm:$0xff]
                  %1930 = vst [vmem:[%s1728 + $0x640] sm:$0xff] %v1929
                  %v1931 = vld [vmem:[%s1727 + $0x328] sm:$0xff]
                  %1932 = vst [vmem:[%s1728 + $0x650] sm:$0xff] %v1931
                  %v1933 = vld [vmem:[%s1727 + $0x330] sm:$0xff]
                  %1934 = vst [vmem:[%s1728 + $0x660] sm:$0xff] %v1933
                  %v1935 = vld [vmem:[%s1727 + $0x338] sm:$0xff]
                  %1936 = vst [vmem:[%s1728 + $0x670] sm:$0xff] %v1935
                  %v1937 = vld [vmem:[%s1727 + $0x340] sm:$0xff]
                  %1938 = vst [vmem:[%s1728 + $0x680] sm:$0xff] %v1937
                  %v1939 = vld [vmem:[%s1727 + $0x348] sm:$0xff]
                  %1940 = vst [vmem:[%s1728 + $0x690] sm:$0xff] %v1939
                  %v1941 = vld [vmem:[%s1727 + $0x350] sm:$0xff]
                  %1942 = vst [vmem:[%s1728 + $0x6a0] sm:$0xff] %v1941
                  %v1943 = vld [vmem:[%s1727 + $0x358] sm:$0xff]
                  %1944 = vst [vmem:[%s1728 + $0x6b0] sm:$0xff] %v1943
                  %v1945 = vld [vmem:[%s1727 + $0x360] sm:$0xff]
                  %1946 = vst [vmem:[%s1728 + $0x6c0] sm:$0xff] %v1945
                  %v1947 = vld [vmem:[%s1727 + $0x368] sm:$0xff]
                  %1948 = vst [vmem:[%s1728 + $0x6d0] sm:$0xff] %v1947
                  %v1949 = vld [vmem:[%s1727 + $0x370] sm:$0xff]
                  %1950 = vst [vmem:[%s1728 + $0x6e0] sm:$0xff] %v1949
                  %v1951 = vld [vmem:[%s1727 + $0x378] sm:$0xff]
                  %1952 = vst [vmem:[%s1728 + $0x6f0] sm:$0xff] %v1951
                  %v1953 = vld [vmem:[%s1727 + $0x380] sm:$0xff]
                  %1954 = vst [vmem:[%s1728 + $0x700] sm:$0xff] %v1953
                  %v1955 = vld [vmem:[%s1727 + $0x388] sm:$0xff]
                  %1956 = vst [vmem:[%s1728 + $0x710] sm:$0xff] %v1955
                  %v1957 = vld [vmem:[%s1727 + $0x390] sm:$0xff]
                  %1958 = vst [vmem:[%s1728 + $0x720] sm:$0xff] %v1957
                  %v1959 = vld [vmem:[%s1727 + $0x398] sm:$0xff]
                  %1960 = vst [vmem:[%s1728 + $0x730] sm:$0xff] %v1959
                  %v1961 = vld [vmem:[%s1727 + $0x3a0] sm:$0xff]
                  %1962 = vst [vmem:[%s1728 + $0x740] sm:$0xff] %v1961
                  %v1963 = vld [vmem:[%s1727 + $0x3a8] sm:$0xff]
                  %1964 = vst [vmem:[%s1728 + $0x750] sm:$0xff] %v1963
                  %v1965 = vld [vmem:[%s1727 + $0x3b0] sm:$0xff]
                  %1966 = vst [vmem:[%s1728 + $0x760] sm:$0xff] %v1965
                  %v1967 = vld [vmem:[%s1727 + $0x3b8] sm:$0xff]
                  %1968 = vst [vmem:[%s1728 + $0x770] sm:$0xff] %v1967
                  %v1969 = vld [vmem:[%s1727 + $0x3c0] sm:$0xff]
                  %1970 = vst [vmem:[%s1728 + $0x780] sm:$0xff] %v1969
                  %v1971 = vld [vmem:[%s1727 + $0x3c8] sm:$0xff]
                  %1972 = vst [vmem:[%s1728 + $0x790] sm:$0xff] %v1971
                  %v1973 = vld [vmem:[%s1727 + $0x3d0] sm:$0xff]
                  %1974 = vst [vmem:[%s1728 + $0x7a0] sm:$0xff] %v1973
                  %v1975 = vld [vmem:[%s1727 + $0x3d8] sm:$0xff]
                  %1976 = vst [vmem:[%s1728 + $0x7b0] sm:$0xff] %v1975
                  %v1977 = vld [vmem:[%s1727 + $0x3e0] sm:$0xff]
                  %1978 = vst [vmem:[%s1728 + $0x7c0] sm:$0xff] %v1977
                  %v1979 = vld [vmem:[%s1727 + $0x3e8] sm:$0xff]
                  %1980 = vst [vmem:[%s1728 + $0x7d0] sm:$0xff] %v1979
                  %v1981 = vld [vmem:[%s1727 + $0x3f0] sm:$0xff]
                  %1982 = vst [vmem:[%s1728 + $0x7e0] sm:$0xff] %v1981
                  %v1983 = vld [vmem:[%s1727 + $0x3f8] sm:$0xff]
                  %1984 = vst [vmem:[%s1728 + $0x7f0] sm:$0xff] %v1983
                $region64: #{recognition_head_pallas.1} parent=58 // loop_footer
                  %s1726 = sadd.s32 1, %s1722
                $region65: #{recognition_head_pallas.1} parent=58 // loop_footer_branch
                  %1721 = sbr.rel target = $region61
                $region66: #{recognition_head_pallas.1} parent=58 // loop_exit
                  _
              $region59: #{recognition_head_pallas.1} parent=43 // pred_fallthru
                _
              // Predicated region
              $region67: #{recognition_head_pallas.1} parent=43 // pred_check
                _
              $region68: #{recognition_head_pallas.1} parent=43 // pred_check_branch
                %1986 = sbr.rel target = $region70
              $region69: #{recognition_head_pallas.1} parent=43 // pred_region
                _
              $region70: #{recognition_head_pallas.1} parent=43 // pred_fallthru
                _
            $region44: #{recognition_head_pallas.1} parent=39 // pred_fallthru
              _
            // Predicated region
            $region45: #{recognition_head_pallas.1} parent=39 // pred_check
              _
            $region46: #{recognition_head_pallas.1} parent=39 // pred_check_branch
              %1453 = sbr.rel target = $region48
            $region47: #{recognition_head_pallas.1} parent=39 // pred_region
              loop: start=0, step=1, limit=1
              $region49: #{recognition_head_pallas.1} parent=47 // loop_pre_header
                _
              $region50: #{recognition_head_pallas.1} parent=47 // loop_header
                %s1456 = sphi 0, %s1460
                %p1457 = scmp.ge.s32.totalorder %s1456, 1
                %s1461 = sphi %s1439, %s1439
                %s1462 = sphi %s1447, %s1447
              $region51: #{recognition_head_pallas.1} parent=47 // loop_header_branch
                %1459 = sbr.rel (%p1457) target = $region55
              $region52: #{recognition_head_pallas.1} parent=47 // loop_body
                %v1463 = vld [vmem:[%s1461] sm:$0xff]
                %1464 = vst [vmem:[%s1462] sm:$0xff] %v1463
                %v1465 = vld [vmem:[%s1461 + $0x8] sm:$0xff]
                %1466 = vst [vmem:[%s1462 + $0x10] sm:$0xff] %v1465
                %v1467 = vld [vmem:[%s1461 + $0x10] sm:$0xff]
                %1468 = vst [vmem:[%s1462 + $0x20] sm:$0xff] %v1467
                %v1469 = vld [vmem:[%s1461 + $0x18] sm:$0xff]
                %1470 = vst [vmem:[%s1462 + $0x30] sm:$0xff] %v1469
                %v1471 = vld [vmem:[%s1461 + $0x20] sm:$0xff]
                %1472 = vst [vmem:[%s1462 + $0x40] sm:$0xff] %v1471
                %v1473 = vld [vmem:[%s1461 + $0x28] sm:$0xff]
                %1474 = vst [vmem:[%s1462 + $0x50] sm:$0xff] %v1473
                %v1475 = vld [vmem:[%s1461 + $0x30] sm:$0xff]
                %1476 = vst [vmem:[%s1462 + $0x60] sm:$0xff] %v1475
                %v1477 = vld [vmem:[%s1461 + $0x38] sm:$0xff]
                %1478 = vst [vmem:[%s1462 + $0x70] sm:$0xff] %v1477
                %v1479 = vld [vmem:[%s1461 + $0x40] sm:$0xff]
                %1480 = vst [vmem:[%s1462 + $0x80] sm:$0xff] %v1479
                %v1481 = vld [vmem:[%s1461 + $0x48] sm:$0xff]
                %1482 = vst [vmem:[%s1462 + $0x90] sm:$0xff] %v1481
                %v1483 = vld [vmem:[%s1461 + $0x50] sm:$0xff]
                %1484 = vst [vmem:[%s1462 + $0xa0] sm:$0xff] %v1483
                %v1485 = vld [vmem:[%s1461 + $0x58] sm:$0xff]
                %1486 = vst [vmem:[%s1462 + $0xb0] sm:$0xff] %v1485
                %v1487 = vld [vmem:[%s1461 + $0x60] sm:$0xff]
                %1488 = vst [vmem:[%s1462 + $0xc0] sm:$0xff] %v1487
                %v1489 = vld [vmem:[%s1461 + $0x68] sm:$0xff]
                %1490 = vst [vmem:[%s1462 + $0xd0] sm:$0xff] %v1489
                %v1491 = vld [vmem:[%s1461 + $0x70] sm:$0xff]
                %1492 = vst [vmem:[%s1462 + $0xe0] sm:$0xff] %v1491
                %v1493 = vld [vmem:[%s1461 + $0x78] sm:$0xff]
                %1494 = vst [vmem:[%s1462 + $0xf0] sm:$0xff] %v1493
                %v1495 = vld [vmem:[%s1461 + $0x80] sm:$0xff]
                %1496 = vst [vmem:[%s1462 + $0x100] sm:$0xff] %v1495
                %v1497 = vld [vmem:[%s1461 + $0x88] sm:$0xff]
                %1498 = vst [vmem:[%s1462 + $0x110] sm:$0xff] %v1497
                %v1499 = vld [vmem:[%s1461 + $0x90] sm:$0xff]
                %1500 = vst [vmem:[%s1462 + $0x120] sm:$0xff] %v1499
                %v1501 = vld [vmem:[%s1461 + $0x98] sm:$0xff]
                %1502 = vst [vmem:[%s1462 + $0x130] sm:$0xff] %v1501
                %v1503 = vld [vmem:[%s1461 + $0xa0] sm:$0xff]
                %1504 = vst [vmem:[%s1462 + $0x140] sm:$0xff] %v1503
                %v1505 = vld [vmem:[%s1461 + $0xa8] sm:$0xff]
                %1506 = vst [vmem:[%s1462 + $0x150] sm:$0xff] %v1505
                %v1507 = vld [vmem:[%s1461 + $0xb0] sm:$0xff]
                %1508 = vst [vmem:[%s1462 + $0x160] sm:$0xff] %v1507
                %v1509 = vld [vmem:[%s1461 + $0xb8] sm:$0xff]
                %1510 = vst [vmem:[%s1462 + $0x170] sm:$0xff] %v1509
                %v1511 = vld [vmem:[%s1461 + $0xc0] sm:$0xff]
                %1512 = vst [vmem:[%s1462 + $0x180] sm:$0xff] %v1511
                %v1513 = vld [vmem:[%s1461 + $0xc8] sm:$0xff]
                %1514 = vst [vmem:[%s1462 + $0x190] sm:$0xff] %v1513
                %v1515 = vld [vmem:[%s1461 + $0xd0] sm:$0xff]
                %1516 = vst [vmem:[%s1462 + $0x1a0] sm:$0xff] %v1515
                %v1517 = vld [vmem:[%s1461 + $0xd8] sm:$0xff]
                %1518 = vst [vmem:[%s1462 + $0x1b0] sm:$0xff] %v1517
                %v1519 = vld [vmem:[%s1461 + $0xe0] sm:$0xff]
                %1520 = vst [vmem:[%s1462 + $0x1c0] sm:$0xff] %v1519
                %v1521 = vld [vmem:[%s1461 + $0xe8] sm:$0xff]
                %1522 = vst [vmem:[%s1462 + $0x1d0] sm:$0xff] %v1521
                %v1523 = vld [vmem:[%s1461 + $0xf0] sm:$0xff]
                %1524 = vst [vmem:[%s1462 + $0x1e0] sm:$0xff] %v1523
                %v1525 = vld [vmem:[%s1461 + $0xf8] sm:$0xff]
                %1526 = vst [vmem:[%s1462 + $0x1f0] sm:$0xff] %v1525
                %v1527 = vld [vmem:[%s1461 + $0x100] sm:$0xff]
                %1528 = vst [vmem:[%s1462 + $0x200] sm:$0xff] %v1527
                %v1529 = vld [vmem:[%s1461 + $0x108] sm:$0xff]
                %1530 = vst [vmem:[%s1462 + $0x210] sm:$0xff] %v1529
                %v1531 = vld [vmem:[%s1461 + $0x110] sm:$0xff]
                %1532 = vst [vmem:[%s1462 + $0x220] sm:$0xff] %v1531
                %v1533 = vld [vmem:[%s1461 + $0x118] sm:$0xff]
                %1534 = vst [vmem:[%s1462 + $0x230] sm:$0xff] %v1533
                %v1535 = vld [vmem:[%s1461 + $0x120] sm:$0xff]
                %1536 = vst [vmem:[%s1462 + $0x240] sm:$0xff] %v1535
                %v1537 = vld [vmem:[%s1461 + $0x128] sm:$0xff]
                %1538 = vst [vmem:[%s1462 + $0x250] sm:$0xff] %v1537
                %v1539 = vld [vmem:[%s1461 + $0x130] sm:$0xff]
                %1540 = vst [vmem:[%s1462 + $0x260] sm:$0xff] %v1539
                %v1541 = vld [vmem:[%s1461 + $0x138] sm:$0xff]
                %1542 = vst [vmem:[%s1462 + $0x270] sm:$0xff] %v1541
                %v1543 = vld [vmem:[%s1461 + $0x140] sm:$0xff]
                %1544 = vst [vmem:[%s1462 + $0x280] sm:$0xff] %v1543
                %v1545 = vld [vmem:[%s1461 + $0x148] sm:$0xff]
                %1546 = vst [vmem:[%s1462 + $0x290] sm:$0xff] %v1545
                %v1547 = vld [vmem:[%s1461 + $0x150] sm:$0xff]
                %1548 = vst [vmem:[%s1462 + $0x2a0] sm:$0xff] %v1547
                %v1549 = vld [vmem:[%s1461 + $0x158] sm:$0xff]
                %1550 = vst [vmem:[%s1462 + $0x2b0] sm:$0xff] %v1549
                %v1551 = vld [vmem:[%s1461 + $0x160] sm:$0xff]
                %1552 = vst [vmem:[%s1462 + $0x2c0] sm:$0xff] %v1551
                %v1553 = vld [vmem:[%s1461 + $0x168] sm:$0xff]
                %1554 = vst [vmem:[%s1462 + $0x2d0] sm:$0xff] %v1553
                %v1555 = vld [vmem:[%s1461 + $0x170] sm:$0xff]
                %1556 = vst [vmem:[%s1462 + $0x2e0] sm:$0xff] %v1555
                %v1557 = vld [vmem:[%s1461 + $0x178] sm:$0xff]
                %1558 = vst [vmem:[%s1462 + $0x2f0] sm:$0xff] %v1557
                %v1559 = vld [vmem:[%s1461 + $0x180] sm:$0xff]
                %1560 = vst [vmem:[%s1462 + $0x300] sm:$0xff] %v1559
                %v1561 = vld [vmem:[%s1461 + $0x188] sm:$0xff]
                %1562 = vst [vmem:[%s1462 + $0x310] sm:$0xff] %v1561
                %v1563 = vld [vmem:[%s1461 + $0x190] sm:$0xff]
                %1564 = vst [vmem:[%s1462 + $0x320] sm:$0xff] %v1563
                %v1565 = vld [vmem:[%s1461 + $0x198] sm:$0xff]
                %1566 = vst [vmem:[%s1462 + $0x330] sm:$0xff] %v1565
                %v1567 = vld [vmem:[%s1461 + $0x1a0] sm:$0xff]
                %1568 = vst [vmem:[%s1462 + $0x340] sm:$0xff] %v1567
                %v1569 = vld [vmem:[%s1461 + $0x1a8] sm:$0xff]
                %1570 = vst [vmem:[%s1462 + $0x350] sm:$0xff] %v1569
                %v1571 = vld [vmem:[%s1461 + $0x1b0] sm:$0xff]
                %1572 = vst [vmem:[%s1462 + $0x360] sm:$0xff] %v1571
                %v1573 = vld [vmem:[%s1461 + $0x1b8] sm:$0xff]
                %1574 = vst [vmem:[%s1462 + $0x370] sm:$0xff] %v1573
                %v1575 = vld [vmem:[%s1461 + $0x1c0] sm:$0xff]
                %1576 = vst [vmem:[%s1462 + $0x380] sm:$0xff] %v1575
                %v1577 = vld [vmem:[%s1461 + $0x1c8] sm:$0xff]
                %1578 = vst [vmem:[%s1462 + $0x390] sm:$0xff] %v1577
                %v1579 = vld [vmem:[%s1461 + $0x1d0] sm:$0xff]
                %1580 = vst [vmem:[%s1462 + $0x3a0] sm:$0xff] %v1579
                %v1581 = vld [vmem:[%s1461 + $0x1d8] sm:$0xff]
                %1582 = vst [vmem:[%s1462 + $0x3b0] sm:$0xff] %v1581
                %v1583 = vld [vmem:[%s1461 + $0x1e0] sm:$0xff]
                %1584 = vst [vmem:[%s1462 + $0x3c0] sm:$0xff] %v1583
                %v1585 = vld [vmem:[%s1461 + $0x1e8] sm:$0xff]
                %1586 = vst [vmem:[%s1462 + $0x3d0] sm:$0xff] %v1585
                %v1587 = vld [vmem:[%s1461 + $0x1f0] sm:$0xff]
                %1588 = vst [vmem:[%s1462 + $0x3e0] sm:$0xff] %v1587
                %v1589 = vld [vmem:[%s1461 + $0x1f8] sm:$0xff]
                %1590 = vst [vmem:[%s1462 + $0x3f0] sm:$0xff] %v1589
                %v1591 = vld [vmem:[%s1461 + $0x200] sm:$0xff]
                %1592 = vst [vmem:[%s1462 + $0x400] sm:$0xff] %v1591
                %v1593 = vld [vmem:[%s1461 + $0x208] sm:$0xff]
                %1594 = vst [vmem:[%s1462 + $0x410] sm:$0xff] %v1593
                %v1595 = vld [vmem:[%s1461 + $0x210] sm:$0xff]
                %1596 = vst [vmem:[%s1462 + $0x420] sm:$0xff] %v1595
                %v1597 = vld [vmem:[%s1461 + $0x218] sm:$0xff]
                %1598 = vst [vmem:[%s1462 + $0x430] sm:$0xff] %v1597
                %v1599 = vld [vmem:[%s1461 + $0x220] sm:$0xff]
                %1600 = vst [vmem:[%s1462 + $0x440] sm:$0xff] %v1599
                %v1601 = vld [vmem:[%s1461 + $0x228] sm:$0xff]
                %1602 = vst [vmem:[%s1462 + $0x450] sm:$0xff] %v1601
                %v1603 = vld [vmem:[%s1461 + $0x230] sm:$0xff]
                %1604 = vst [vmem:[%s1462 + $0x460] sm:$0xff] %v1603
                %v1605 = vld [vmem:[%s1461 + $0x238] sm:$0xff]
                %1606 = vst [vmem:[%s1462 + $0x470] sm:$0xff] %v1605
                %v1607 = vld [vmem:[%s1461 + $0x240] sm:$0xff]
                %1608 = vst [vmem:[%s1462 + $0x480] sm:$0xff] %v1607
                %v1609 = vld [vmem:[%s1461 + $0x248] sm:$0xff]
                %1610 = vst [vmem:[%s1462 + $0x490] sm:$0xff] %v1609
                %v1611 = vld [vmem:[%s1461 + $0x250] sm:$0xff]
                %1612 = vst [vmem:[%s1462 + $0x4a0] sm:$0xff] %v1611
                %v1613 = vld [vmem:[%s1461 + $0x258] sm:$0xff]
                %1614 = vst [vmem:[%s1462 + $0x4b0] sm:$0xff] %v1613
                %v1615 = vld [vmem:[%s1461 + $0x260] sm:$0xff]
                %1616 = vst [vmem:[%s1462 + $0x4c0] sm:$0xff] %v1615
                %v1617 = vld [vmem:[%s1461 + $0x268] sm:$0xff]
                %1618 = vst [vmem:[%s1462 + $0x4d0] sm:$0xff] %v1617
                %v1619 = vld [vmem:[%s1461 + $0x270] sm:$0xff]
                %1620 = vst [vmem:[%s1462 + $0x4e0] sm:$0xff] %v1619
                %v1621 = vld [vmem:[%s1461 + $0x278] sm:$0xff]
                %1622 = vst [vmem:[%s1462 + $0x4f0] sm:$0xff] %v1621
                %v1623 = vld [vmem:[%s1461 + $0x280] sm:$0xff]
                %1624 = vst [vmem:[%s1462 + $0x500] sm:$0xff] %v1623
                %v1625 = vld [vmem:[%s1461 + $0x288] sm:$0xff]
                %1626 = vst [vmem:[%s1462 + $0x510] sm:$0xff] %v1625
                %v1627 = vld [vmem:[%s1461 + $0x290] sm:$0xff]
                %1628 = vst [vmem:[%s1462 + $0x520] sm:$0xff] %v1627
                %v1629 = vld [vmem:[%s1461 + $0x298] sm:$0xff]
                %1630 = vst [vmem:[%s1462 + $0x530] sm:$0xff] %v1629
                %v1631 = vld [vmem:[%s1461 + $0x2a0] sm:$0xff]
                %1632 = vst [vmem:[%s1462 + $0x540] sm:$0xff] %v1631
                %v1633 = vld [vmem:[%s1461 + $0x2a8] sm:$0xff]
                %1634 = vst [vmem:[%s1462 + $0x550] sm:$0xff] %v1633
                %v1635 = vld [vmem:[%s1461 + $0x2b0] sm:$0xff]
                %1636 = vst [vmem:[%s1462 + $0x560] sm:$0xff] %v1635
                %v1637 = vld [vmem:[%s1461 + $0x2b8] sm:$0xff]
                %1638 = vst [vmem:[%s1462 + $0x570] sm:$0xff] %v1637
                %v1639 = vld [vmem:[%s1461 + $0x2c0] sm:$0xff]
                %1640 = vst [vmem:[%s1462 + $0x580] sm:$0xff] %v1639
                %v1641 = vld [vmem:[%s1461 + $0x2c8] sm:$0xff]
                %1642 = vst [vmem:[%s1462 + $0x590] sm:$0xff] %v1641
                %v1643 = vld [vmem:[%s1461 + $0x2d0] sm:$0xff]
                %1644 = vst [vmem:[%s1462 + $0x5a0] sm:$0xff] %v1643
                %v1645 = vld [vmem:[%s1461 + $0x2d8] sm:$0xff]
                %1646 = vst [vmem:[%s1462 + $0x5b0] sm:$0xff] %v1645
                %v1647 = vld [vmem:[%s1461 + $0x2e0] sm:$0xff]
                %1648 = vst [vmem:[%s1462 + $0x5c0] sm:$0xff] %v1647
                %v1649 = vld [vmem:[%s1461 + $0x2e8] sm:$0xff]
                %1650 = vst [vmem:[%s1462 + $0x5d0] sm:$0xff] %v1649
                %v1651 = vld [vmem:[%s1461 + $0x2f0] sm:$0xff]
                %1652 = vst [vmem:[%s1462 + $0x5e0] sm:$0xff] %v1651
                %v1653 = vld [vmem:[%s1461 + $0x2f8] sm:$0xff]
                %1654 = vst [vmem:[%s1462 + $0x5f0] sm:$0xff] %v1653
                %v1655 = vld [vmem:[%s1461 + $0x300] sm:$0xff]
                %1656 = vst [vmem:[%s1462 + $0x600] sm:$0xff] %v1655
                %v1657 = vld [vmem:[%s1461 + $0x308] sm:$0xff]
                %1658 = vst [vmem:[%s1462 + $0x610] sm:$0xff] %v1657
                %v1659 = vld [vmem:[%s1461 + $0x310] sm:$0xff]
                %1660 = vst [vmem:[%s1462 + $0x620] sm:$0xff] %v1659
                %v1661 = vld [vmem:[%s1461 + $0x318] sm:$0xff]
                %1662 = vst [vmem:[%s1462 + $0x630] sm:$0xff] %v1661
                %v1663 = vld [vmem:[%s1461 + $0x320] sm:$0xff]
                %1664 = vst [vmem:[%s1462 + $0x640] sm:$0xff] %v1663
                %v1665 = vld [vmem:[%s1461 + $0x328] sm:$0xff]
                %1666 = vst [vmem:[%s1462 + $0x650] sm:$0xff] %v1665
                %v1667 = vld [vmem:[%s1461 + $0x330] sm:$0xff]
                %1668 = vst [vmem:[%s1462 + $0x660] sm:$0xff] %v1667
                %v1669 = vld [vmem:[%s1461 + $0x338] sm:$0xff]
                %1670 = vst [vmem:[%s1462 + $0x670] sm:$0xff] %v1669
                %v1671 = vld [vmem:[%s1461 + $0x340] sm:$0xff]
                %1672 = vst [vmem:[%s1462 + $0x680] sm:$0xff] %v1671
                %v1673 = vld [vmem:[%s1461 + $0x348] sm:$0xff]
                %1674 = vst [vmem:[%s1462 + $0x690] sm:$0xff] %v1673
                %v1675 = vld [vmem:[%s1461 + $0x350] sm:$0xff]
                %1676 = vst [vmem:[%s1462 + $0x6a0] sm:$0xff] %v1675
                %v1677 = vld [vmem:[%s1461 + $0x358] sm:$0xff]
                %1678 = vst [vmem:[%s1462 + $0x6b0] sm:$0xff] %v1677
                %v1679 = vld [vmem:[%s1461 + $0x360] sm:$0xff]
                %1680 = vst [vmem:[%s1462 + $0x6c0] sm:$0xff] %v1679
                %v1681 = vld [vmem:[%s1461 + $0x368] sm:$0xff]
                %1682 = vst [vmem:[%s1462 + $0x6d0] sm:$0xff] %v1681
                %v1683 = vld [vmem:[%s1461 + $0x370] sm:$0xff]
                %1684 = vst [vmem:[%s1462 + $0x6e0] sm:$0xff] %v1683
                %v1685 = vld [vmem:[%s1461 + $0x378] sm:$0xff]
                %1686 = vst [vmem:[%s1462 + $0x6f0] sm:$0xff] %v1685
                %v1687 = vld [vmem:[%s1461 + $0x380] sm:$0xff]
                %1688 = vst [vmem:[%s1462 + $0x700] sm:$0xff] %v1687
                %v1689 = vld [vmem:[%s1461 + $0x388] sm:$0xff]
                %1690 = vst [vmem:[%s1462 + $0x710] sm:$0xff] %v1689
                %v1691 = vld [vmem:[%s1461 + $0x390] sm:$0xff]
                %1692 = vst [vmem:[%s1462 + $0x720] sm:$0xff] %v1691
                %v1693 = vld [vmem:[%s1461 + $0x398] sm:$0xff]
                %1694 = vst [vmem:[%s1462 + $0x730] sm:$0xff] %v1693
                %v1695 = vld [vmem:[%s1461 + $0x3a0] sm:$0xff]
                %1696 = vst [vmem:[%s1462 + $0x740] sm:$0xff] %v1695
                %v1697 = vld [vmem:[%s1461 + $0x3a8] sm:$0xff]
                %1698 = vst [vmem:[%s1462 + $0x750] sm:$0xff] %v1697
                %v1699 = vld [vmem:[%s1461 + $0x3b0] sm:$0xff]
                %1700 = vst [vmem:[%s1462 + $0x760] sm:$0xff] %v1699
                %v1701 = vld [vmem:[%s1461 + $0x3b8] sm:$0xff]
                %1702 = vst [vmem:[%s1462 + $0x770] sm:$0xff] %v1701
                %v1703 = vld [vmem:[%s1461 + $0x3c0] sm:$0xff]
                %1704 = vst [vmem:[%s1462 + $0x780] sm:$0xff] %v1703
                %v1705 = vld [vmem:[%s1461 + $0x3c8] sm:$0xff]
                %1706 = vst [vmem:[%s1462 + $0x790] sm:$0xff] %v1705
                %v1707 = vld [vmem:[%s1461 + $0x3d0] sm:$0xff]
                %1708 = vst [vmem:[%s1462 + $0x7a0] sm:$0xff] %v1707
                %v1709 = vld [vmem:[%s1461 + $0x3d8] sm:$0xff]
                %1710 = vst [vmem:[%s1462 + $0x7b0] sm:$0xff] %v1709
                %v1711 = vld [vmem:[%s1461 + $0x3e0] sm:$0xff]
                %1712 = vst [vmem:[%s1462 + $0x7c0] sm:$0xff] %v1711
                %v1713 = vld [vmem:[%s1461 + $0x3e8] sm:$0xff]
                %1714 = vst [vmem:[%s1462 + $0x7d0] sm:$0xff] %v1713
                %v1715 = vld [vmem:[%s1461 + $0x3f0] sm:$0xff]
                %1716 = vst [vmem:[%s1462 + $0x7e0] sm:$0xff] %v1715
                %v1717 = vld [vmem:[%s1461 + $0x3f8] sm:$0xff]
                %1718 = vst [vmem:[%s1462 + $0x7f0] sm:$0xff] %v1717
              $region53: #{recognition_head_pallas.1} parent=47 // loop_footer
                %s1460 = sadd.s32 1, %s1456
              $region54: #{recognition_head_pallas.1} parent=47 // loop_footer_branch
                %1455 = sbr.rel target = $region50
              $region55: #{recognition_head_pallas.1} parent=47 // loop_exit
                _
            $region48: #{recognition_head_pallas.1} parent=39 // pred_fallthru
              _
          $region40: #{recognition_head_pallas.1} parent=35 // pred_fallthru
            _
          %1987 = vnop
        $region36: #{recognition_head_pallas.1} parent=31 // pred_fallthru
          _
      $region32: #{recognition_head_pallas.1} parent=5 // pred_fallthru
        _
      %p1988 = scmp.le.s32.totalorder 2, %s9
      // Predicated region
      $region71: #{recognition_head_pallas.1} parent=5 // pred_check
        %p1989 = pneg %p1988
      $region72: #{recognition_head_pallas.1} parent=5 // pred_check_branch
        %1991 = sbr.rel (%p1989) target = $region74
      $region73: #{recognition_head_pallas.1} parent=5 // pred_region
        %s1992 = ssub.s32 %s9, 2
        // Predicated region
        $region75: #{recognition_head_pallas.1} parent=73 // pred_check
          %p1993 = pneg %p122
        $region76: #{recognition_head_pallas.1} parent=73 // pred_check_branch
          %1995 = sbr.rel (%p1993) target = $region78
        $region77: #{recognition_head_pallas.1} parent=73 // pred_region
          %s1996 = sand.u32 %s107, 1
          %s1997 = sand.u32 %s107, 1
          %s1998 = smul.addr %s1997, 1024
          %s1999 = scalar_lea.vmem [#allocation2], %s1998
        $region78: #{recognition_head_pallas.1} parent=73 // pred_fallthru
          _
      $region74: #{recognition_head_pallas.1} parent=5 // pred_fallthru
        _
    $region6: #{recognition_head_pallas.1} parent=1 // loop_footer
      %s13 = sadd.s32 1, %s9
    $region7: #{recognition_head_pallas.1} parent=1 // loop_footer_branch
      %8 = sbr.rel target = $region3
    $region8: #{recognition_head_pallas.1} parent=1 // loop_exit
      _

</llo_original>
